<compile_context>
chip_gen: v7x
topology: tpu7x:2x2x1
jax: 0.10.0
libtpu: 0.0.40
codegen_flags: <defaults>
</compile_context>

<pallas_src>
import numpy as np
import jax
import jax.numpy as jnp
from jax import lax
from jax.experimental import pallas as pl
from jax.experimental.pallas import tpu as pltpu

BN_EPS = 1e-5  # torch.nn.BatchNorm2d default


# ----------------------------------------------------------------------------
# Pallas kernel: fused (im2col-matmul) conv + folded BN affine + ELU
# ----------------------------------------------------------------------------
def _conv_bn_elu_kernel(x_ref, w_ref, scale_ref, shift_ref, o_ref):
    x = x_ref[...]                                           # (TM, K*K*Cin)
    w = w_ref[...]                                           # (K*K*Cin, Cout)
    y = jnp.dot(x, w, preferred_element_type=jnp.float32)    # MXU matmul
    y = y * scale_ref[...] + shift_ref[...]                  # bias + BN folded
    # ELU(alpha=1): x if x>0 else exp(x)-1 (clamp exp arg to avoid overflow in
    # the unselected branch)
    o_ref[...] = jnp.where(
        y > 0.0, y, jnp.exp(jnp.minimum(y, 0.0)) - 1.0).astype(o_ref.dtype)


def _round_up(x, m):
    return ((x + m - 1) // m) * m


def _fused_matmul_bn_elu(xcol, wcol, eff_scale, eff_shift, *, block_rows=256):
    M, Kc = xcol.shape
    Cout = wcol.shape[1]
    TM = min(block_rows, _round_up(M, 8))
    Mp = _round_up(M, TM)
    if Mp != M:
        xcol = jnp.pad(xcol, ((0, Mp - M), (0, 0)))
    out = pl.pallas_call(
        _conv_bn_elu_kernel,
        out_shape=jax.ShapeDtypeStruct((Mp, Cout), xcol.dtype),
        grid=(Mp // TM,),
        in_specs=[
            pl.BlockSpec((TM, Kc), lambda i: (i, 0)),
            pl.BlockSpec((Kc, Cout), lambda i: (0, 0)),
            pl.BlockSpec((1, Cout), lambda i: (0, 0)),
            pl.BlockSpec((1, Cout), lambda i: (0, 0)),
        ],
        out_specs=pl.BlockSpec((TM, Cout), lambda i: (i, 0)),
        compiler_params=pltpu.CompilerParams(
            dimension_semantics=("parallel",)),
    )(xcol, wcol, eff_scale, eff_shift)
    return out[:M]


# ----------------------------------------------------------------------------
# wrapper glue: im2col, weight/BN folding, layout transposes
# ----------------------------------------------------------------------------
def _im2col(x_nhwc, k, stride):
    """Pad like F.pad((p,p,p,p)) then extract K*K taps at the given stride."""
    B, H, W, C = x_nhwc.shape
    p = (k - 1) // 2
    xp = jnp.pad(x_nhwc, ((0, 0), (p, p), (p, p), (0, 0)))
    Ho = (H + 2 * p - k) // stride + 1
    Wo = (W + 2 * p - k) // stride + 1
    cols = []
    for kh in range(k):
        for kw in range(k):
            tap = xp[:, kh: kh + (Ho - 1) * stride + 1: stride,
                        kw: kw + (Wo - 1) * stride + 1: stride, :]
            cols.append(tap)                                  # (B, Ho, Wo, C)
    xcol = jnp.concatenate(cols, axis=-1)                     # (B,Ho,Wo,K*K*C)
    return xcol.reshape(B * Ho * Wo, k * k * C), Ho, Wo


def conv_bn_elu(x_nhwc, p, stride):
    """One `conv` sub-module: Conv2d(pad=same-style) + BatchNorm(eval) + ELU."""
    w = p["w"]                                                # (Cout,Cin,K,K)
    Cout, Cin, K, _ = w.shape
    B = x_nhwc.shape[0]

    xcol, Ho, Wo = _im2col(x_nhwc, K, stride)
    # im2col column order is (kh, kw, cin) -> weight matrix must match.
    wcol = jnp.transpose(w, (2, 3, 1, 0)).reshape(K * K * Cin, Cout)

    # Fold conv bias + BatchNorm (eval) into a per-channel affine:
    #   BN(z + b) = (z + b - mean) * gamma/sqrt(var+eps) + beta
    scale = p["gamma"] / jnp.sqrt(p["var"] + BN_EPS)
    eff_scale = scale.reshape(1, Cout)
    eff_shift = ((p["b"] - p["mean"]) * scale + p["beta"]).reshape(1, Cout)

    y = _fused_matmul_bn_elu(xcol, wcol, eff_scale, eff_shift)
    return y.reshape(B, Ho, Wo, Cout)


def convblock_forward(x_nchw, params):
    """Matches convblock.forward: conv1 (stride 1) then conv2 (stride 2)."""
    x = jnp.transpose(x_nchw, (0, 2, 3, 1))                   # NCHW -> NHWC
    x = conv_bn_elu(x, params["conv1"], stride=1)
    x = conv_bn_elu(x, params["conv2"], stride=2)
    return jnp.transpose(x, (0, 3, 1, 2))                     # NHWC -> NCHW


# ----------------------------------------------------------------------------
# pure-JAX reference (XLA convolution) for a numerical sanity check
# ----------------------------------------------------------------------------
def _ref_conv_bn_elu(x_nhwc, p, stride):
    w = p["w"]
    Cout, Cin, K, _ = w.shape
    pad = (K - 1) // 2
    y = lax.conv_general_dilated(
        x_nhwc, jnp.transpose(w, (2, 3, 1, 0)),               # HWIO
        window_strides=(stride, stride),
        padding=((pad, pad), (pad, pad)),
        dimension_numbers=("NHWC", "HWIO", "NHWC"),
        precision=lax.Precision.HIGHEST)
    y = y + p["b"].reshape(1, 1, 1, Cout)
    y = (y - p["mean"]) / jnp.sqrt(p["var"] + BN_EPS) * p["gamma"] + p["beta"]
    return jnp.where(y > 0, y, jnp.expm1(jnp.minimum(y, 0.0)))


def ref_convblock(x_nchw, params):
    x = jnp.transpose(x_nchw, (0, 2, 3, 1))
    x = _ref_conv_bn_elu(x, params["conv1"], 1)
    x = _ref_conv_bn_elu(x, params["conv2"], 2)
    return jnp.transpose(x, (0, 3, 1, 2))


# ----------------------------------------------------------------------------
# deterministic parameter init (shapes match the PyTorch __init__)
# ----------------------------------------------------------------------------
def init_params(key, cin, cout, k):
    def layer(lkey, ci, co):
        k0, k1, k2, k3, k4, k5 = jax.random.split(lkey, 6)
        return dict(
            w=jax.random.normal(k0, (co, ci, k, k), jnp.float32) * 0.1,
            b=jax.random.normal(k1, (co,), jnp.float32) * 0.1,
            gamma=1.0 + 0.1 * jax.random.normal(k2, (co,), jnp.float32),
            beta=0.1 * jax.random.normal(k3, (co,), jnp.float32),
            mean=0.1 * jax.random.normal(k4, (co,), jnp.float32),
            var=jax.random.uniform(k5, (co,), jnp.float32, 0.5, 1.5),
        )
    ka, kb = jax.random.split(key)
    return dict(conv1=layer(ka, cin, cout), conv2=layer(kb, cout, cout))


# ----------------------------------------------------------------------------
if __name__ == "__main__":
    B, Cin, H, W = 2, 8, 16, 16
    Cout, K = 32, 3

    key = jax.random.PRNGKey(0)
    kx, kp = jax.random.split(key)
    x = jax.random.normal(kx, (B, Cin, H, W), jnp.float32)
    params = init_params(kp, Cin, Cout, K)

    out = jax.jit(convblock_forward)(x, params)
    jax.block_until_ready(out)

    ref = ref_convblock(x, params)
    jax.block_until_ready(ref)

    assert out.shape == (B, Cout, H // 2, W // 2), out.shape
    np.testing.assert_allclose(np.asarray(out), np.asarray(ref),
                               rtol=2e-2, atol=2e-2)
    print("KERNEL_OK")
</pallas_src>

<mosaic_0001>
module attributes {stable_mosaic.version = 11 : i64} {
  func.func @_conv_bn_elu_kernel(%arg0: i32, %arg1: memref<256x72xf32, #tpu.memory_space<vmem>>, %arg2: memref<72x32xf32, #tpu.memory_space<vmem>>, %arg3: memref<1x32xf32, #tpu.memory_space<vmem>>, %arg4: memref<1x32xf32, #tpu.memory_space<vmem>>, %arg5: memref<256x32xf32, #tpu.memory_space<vmem>>) attributes {dimension_semantics = [#tpu.dimension_semantics<parallel>], iteration_bounds = array<i64: 2>, scalar_prefetch = 0 : i64, scratch_operands = 0 : i64, tpu.core_type = #tpu.core_type<tc>, window_params = [{transform_indices = @transform_0, window_bounds = array<i64: 256, 72>}, {pipeline_mode = #tpu.pipeline_mode<synchronous>, transform_indices = @transform_1, window_bounds = array<i64: 72, 32>}, {pipeline_mode = #tpu.pipeline_mode<synchronous>, transform_indices = @transform_2, window_bounds = array<i64: 1, 32>}, {pipeline_mode = #tpu.pipeline_mode<synchronous>, transform_indices = @transform_3, window_bounds = array<i64: 1, 32>}, {transform_indices = @transform_4, window_bounds = array<i64: 256, 32>}]} {
    %c0 = arith.constant 0 : index
    %c0_0 = arith.constant 0 : index
    %0 = vector.load %arg1[%c0, %c0_0] : memref<256x72xf32, #tpu.memory_space<vmem>>, vector<256x72xf32>
    %c0_1 = arith.constant 0 : index
    %c0_2 = arith.constant 0 : index
    %1 = vector.load %arg2[%c0_1, %c0_2] : memref<72x32xf32, #tpu.memory_space<vmem>>, vector<72x32xf32>
    %cst = arith.constant dense<0.000000e+00> : vector<256x32xf32>
    %2 = tpu.matmul %0, %1, %cst {dimension_numbers = #tpu.dot_dimension_numbers<[1], [0], [0], [1], [0, 0, 1, 1], [], []>} : vector<256x72xf32>, vector<72x32xf32>, vector<256x32xf32> -> vector<256x32xf32>
    %c0_3 = arith.constant 0 : index
    %c0_4 = arith.constant 0 : index
    %3 = vector.load %arg3[%c0_3, %c0_4] : memref<1x32xf32, #tpu.memory_space<vmem>>, vector<1x32xf32>
    %4 = vector.broadcast %3 : vector<1x32xf32> to vector<256x32xf32>
    %5 = arith.mulf %2, %4 : vector<256x32xf32>
    %c0_5 = arith.constant 0 : index
    %c0_6 = arith.constant 0 : index
    %6 = vector.load %arg4[%c0_5, %c0_6] : memref<1x32xf32, #tpu.memory_space<vmem>>, vector<1x32xf32>
    %7 = vector.broadcast %6 : vector<1x32xf32> to vector<256x32xf32>
    %8 = arith.addf %5, %7 : vector<256x32xf32>
    %cst_7 = arith.constant 0.000000e+00 : f32
    %9 = vector.broadcast %cst_7 : f32 to vector<256x32xf32>
    %10 = arith.cmpf ogt, %8, %9 : vector<256x32xf32>
    %cst_8 = arith.constant 0.000000e+00 : f32
    %11 = vector.broadcast %cst_8 : f32 to vector<256x32xf32>
    %12 = arith.minimumf %8, %11 : vector<256x32xf32>
    %13 = math.exp %12 : vector<256x32xf32>
    %cst_9 = arith.constant 1.000000e+00 : f32
    %14 = vector.broadcast %cst_9 : f32 to vector<256x32xf32>
    %15 = arith.subf %13, %14 : vector<256x32xf32>
    %16 = arith.select %10, %8, %15 : vector<256x32xi1>, vector<256x32xf32>
    %c0_10 = arith.constant 0 : index
    %c0_11 = arith.constant 0 : index
    %17 = vector.load %arg5[%c0_10, %c0_11] : memref<256x32xf32, #tpu.memory_space<vmem>>, vector<256x32xf32>
    tpu.vector_store %arg5[%c0_10, %c0_11], %16 {strides = array<i32>} : memref<256x32xf32, #tpu.memory_space<vmem>>, vector<256x32xf32>,
    return
  }
  func.func @transform_0(%arg0: i32) -> (i32, i32) {
    %c0_i32 = arith.constant 0 : i32
    %c0_i32_0 = arith.constant 0 : i32
    return %arg0, %c0_i32 : i32, i32
  }
  func.func @transform_1(%arg0: i32) -> (i32, i32) {
    %c0_i32 = arith.constant 0 : i32
    %c0_i32_0 = arith.constant 0 : i32
    %c0_i32_1 = arith.constant 0 : i32
    return %c0_i32, %c0_i32_0 : i32, i32
  }
  func.func @transform_2(%arg0: i32) -> (i32, i32) {
    %c0_i32 = arith.constant 0 : i32
    %c0_i32_0 = arith.constant 0 : i32
    %c0_i32_1 = arith.constant 0 : i32
    return %c0_i32, %c0_i32_0 : i32, i32
  }
  func.func @transform_3(%arg0: i32) -> (i32, i32) {
    %c0_i32 = arith.constant 0 : i32
    %c0_i32_0 = arith.constant 0 : i32
    %c0_i32_1 = arith.constant 0 : i32
    return %c0_i32, %c0_i32_0 : i32, i32
  }
  func.func @transform_4(%arg0: i32) -> (i32, i32) {
    %c0_i32 = arith.constant 0 : i32
    %c0_i32_0 = arith.constant 0 : i32
    return %arg0, %c0_i32 : i32, i32
  }
}

module attributes {stable_mosaic.version = 11 : i64} {
  func.func @_conv_bn_elu_kernel(%arg0: i32, %arg1: memref<128x288xf32, #tpu.memory_space<vmem>>, %arg2: memref<288x32xf32, #tpu.memory_space<vmem>>, %arg3: memref<1x32xf32, #tpu.memory_space<vmem>>, %arg4: memref<1x32xf32, #tpu.memory_space<vmem>>, %arg5: memref<128x32xf32, #tpu.memory_space<vmem>>) attributes {dimension_semantics = [#tpu.dimension_semantics<parallel>], iteration_bounds = array<i64: 1>, scalar_prefetch = 0 : i64, scratch_operands = 0 : i64, tpu.core_type = #tpu.core_type<tc>, window_params = [{transform_indices = @transform_0, window_bounds = array<i64: 128, 288>}, {pipeline_mode = #tpu.pipeline_mode<synchronous>, transform_indices = @transform_1, window_bounds = array<i64: 288, 32>}, {pipeline_mode = #tpu.pipeline_mode<synchronous>, transform_indices = @transform_2, window_bounds = array<i64: 1, 32>}, {pipeline_mode = #tpu.pipeline_mode<synchronous>, transform_indices = @transform_3, window_bounds = array<i64: 1, 32>}, {transform_indices = @transform_4, window_bounds = array<i64: 128, 32>}]} {
    %c0 = arith.constant 0 : index
    %c0_0 = arith.constant 0 : index
    %0 = vector.load %arg1[%c0, %c0_0] : memref<128x288xf32, #tpu.memory_space<vmem>>, vector<128x288xf32>
    %c0_1 = arith.constant 0 : index
    %c0_2 = arith.constant 0 : index
    %1 = vector.load %arg2[%c0_1, %c0_2] : memref<288x32xf32, #tpu.memory_space<vmem>>, vector<288x32xf32>
    %cst = arith.constant dense<0.000000e+00> : vector<128x32xf32>
    %2 = tpu.matmul %0, %1, %cst {dimension_numbers = #tpu.dot_dimension_numbers<[1], [0], [0], [1], [0, 0, 1, 1], [], []>} : vector<128x288xf32>, vector<288x32xf32>, vector<128x32xf32> -> vector<128x32xf32>
    %c0_3 = arith.constant 0 : index
    %c0_4 = arith.constant 0 : index
    %3 = vector.load %arg3[%c0_3, %c0_4] : memref<1x32xf32, #tpu.memory_space<vmem>>, vector<1x32xf32>
    %4 = vector.broadcast %3 : vector<1x32xf32> to vector<128x32xf32>
    %5 = arith.mulf %2, %4 : vector<128x32xf32>
    %c0_5 = arith.constant 0 : index
    %c0_6 = arith.constant 0 : index
    %6 = vector.load %arg4[%c0_5, %c0_6] : memref<1x32xf32, #tpu.memory_space<vmem>>, vector<1x32xf32>
    %7 = vector.broadcast %6 : vector<1x32xf32> to vector<128x32xf32>
    %8 = arith.addf %5, %7 : vector<128x32xf32>
    %cst_7 = arith.constant 0.000000e+00 : f32
    %9 = vector.broadcast %cst_7 : f32 to vector<128x32xf32>
    %10 = arith.cmpf ogt, %8, %9 : vector<128x32xf32>
    %cst_8 = arith.constant 0.000000e+00 : f32
    %11 = vector.broadcast %cst_8 : f32 to vector<128x32xf32>
    %12 = arith.minimumf %8, %11 : vector<128x32xf32>
    %13 = math.exp %12 : vector<128x32xf32>
    %cst_9 = arith.constant 1.000000e+00 : f32
    %14 = vector.broadcast %cst_9 : f32 to vector<128x32xf32>
    %15 = arith.subf %13, %14 : vector<128x32xf32>
    %16 = arith.select %10, %8, %15 : vector<128x32xi1>, vector<128x32xf32>
    %c0_10 = arith.constant 0 : index
    %c0_11 = arith.constant 0 : index
    %17 = vector.load %arg5[%c0_10, %c0_11] : memref<128x32xf32, #tpu.memory_space<vmem>>, vector<128x32xf32>
    tpu.vector_store %arg5[%c0_10, %c0_11], %16 {strides = array<i32>} : memref<128x32xf32, #tpu.memory_space<vmem>>, vector<128x32xf32>,
    return
  }
  func.func @transform_0(%arg0: i32) -> (i32, i32) {
    %c0_i32 = arith.constant 0 : i32
    %c0_i32_0 = arith.constant 0 : i32
    return %arg0, %c0_i32 : i32, i32
  }
  func.func @transform_1(%arg0: i32) -> (i32, i32) {
    %c0_i32 = arith.constant 0 : i32
    %c0_i32_0 = arith.constant 0 : i32
    %c0_i32_1 = arith.constant 0 : i32
    return %c0_i32, %c0_i32_0 : i32, i32
  }
  func.func @transform_2(%arg0: i32) -> (i32, i32) {
    %c0_i32 = arith.constant 0 : i32
    %c0_i32_0 = arith.constant 0 : i32
    %c0_i32_1 = arith.constant 0 : i32
    return %c0_i32, %c0_i32_0 : i32, i32
  }
  func.func @transform_3(%arg0: i32) -> (i32, i32) {
    %c0_i32 = arith.constant 0 : i32
    %c0_i32_0 = arith.constant 0 : i32
    %c0_i32_1 = arith.constant 0 : i32
    return %c0_i32, %c0_i32_0 : i32, i32
  }
  func.func @transform_4(%arg0: i32) -> (i32, i32) {
    %c0_i32 = arith.constant 0 : i32
    %c0_i32_0 = arith.constant 0 : i32
    return %arg0, %c0_i32 : i32, i32
  }
}

</mosaic_0001>

<llo_original>
// kernel: convblock_forward.2
$region0: #{convblock_forward.2}
  #allocation0 [shape = 'u32[]', space=smem, size = 0x4, offset = 0x4, fixed_abs, tag = 'smem constant byte address 0x4 - core index']
  #allocation1 [shape = 'u32[144,128]{1,0:T(1,128)}', space=vmem, size = 0x12000, scoped, tag = 'internal scratch']
  %s0 = inlined_call_operand.vmem [shape: f32[512,72], index: 0, kind: input, shape index: {}]
  %s1 = inlined_call_operand.vmem [shape: f32[72,32], index: 1, kind: input, shape index: {}]
  %s2 = inlined_call_operand.vmem [shape: f32[1,32], index: 2, kind: input, shape index: {}]
  %s3 = inlined_call_operand.vmem [shape: f32[1,32], index: 3, kind: input, shape index: {}]
  %s4 = inlined_call_operand.vmem [shape: f32[512,32], index: 4, kind: output, shape index: {}]
  %s5 = sld [smem:[#allocation0]]
  $region49: #{convblock_forward.2} parent=0
    _
  %s7 = ssub.s32 1, %s5
  %s8 = scalar_select 0, %s7, %s5
  loop: start=0, step=1, limit=4
  $region2: #{convblock_forward.2} parent=0 // loop_pre_header
    _
  $region3: #{convblock_forward.2} parent=0 // loop_header
    %s10 = sphi 0, %s14
    %p11 = scmp.ge.s32.totalorder %s10, 4
    %s20 = sphi 0, %s22
    %s23 = sphi 0, %s20
    %s24 = sphi 0, %s23
    %s40 = sphi 0, %s24
    %s44 = sphi 0, %s44
    %s46 = sphi 0, %s44
    %s47 = sphi 0, %s46
    %s61 = sphi 0, %s47
    %s65 = sphi 0, %s65
    %s67 = sphi 0, %s65
    %s68 = sphi 0, %s67
    %s82 = sphi 0, %s68
    %s86 = sphi 0, %s86
    %s88 = sphi 0, %s86
    %s89 = sphi 0, %s88
    %s103 = sphi 0, %s89
    %s109 = sphi 0, %s111
    %s112 = sphi 0, %s109
    %s113 = sphi 0, %s112
    %s129 = sphi 0, %s113
  $region4: #{convblock_forward.2} parent=0 // loop_header_branch
    %13 = sbr.rel (%p11) target = $region8
  $region5: #{convblock_forward.2} parent=0 // loop_body
    %s15 = ssub.s32 %s10, 1
    %s16 = ssub.s32 %s10, 2
    %s17 = sadd.s32 %s10, 1
    %s18 = ssub.s32 %s10, %s17
    %p19 = scmp.eq.s32.totalorder %s18, 0
    %s21 = sadd.s32 %s20, 1
    %s22 = scalar_select %p19, %s20, %s21
    %p25 = pneg %p19
    %p26 = scmp.eq.s32.totalorder %s10, 1
    %p27 = por %p25, %p26
    %p28 = scmp.ne.s32.totalorder %s20, %s23
    %p29 = scmp.eq.s32.totalorder %s10, 0
    %p30 = por %p28, %p29
    %p31 = scmp.ne.s32.totalorder %s20, %s23
    %p32 = scmp.eq.s32.totalorder %s15, 1
    %p33 = por %p31, %p32
    %p34 = scmp.ne.s32.totalorder %s23, %s24
    %p35 = scmp.eq.s32.totalorder %s15, 0
    %p36 = por %p34, %p35
    %p37 = scmp.ne.s32.totalorder %s23, %s24
    %p38 = scmp.eq.s32.totalorder %s16, 1
    %p39 = por %p37, %p38
    %p41 = scmp.ne.s32.totalorder %s24, %s40
    %p42 = scmp.eq.s32.totalorder %s16, 0
    %p43 = por %p41, %p42
    %s45 = sadd.s32 %s44, 1
    %p48 = scmp.eq.s32.totalorder %s10, 1
    %p49 = scmp.ne.s32.totalorder %s44, %s46
    %p50 = scmp.eq.s32.totalorder %s10, 0
    %p51 = por %p49, %p50
    %p52 = scmp.ne.s32.totalorder %s44, %s46
    %p53 = scmp.eq.s32.totalorder %s15, 1
    %p54 = por %p52, %p53
    %p55 = scmp.ne.s32.totalorder %s46, %s47
    %p56 = scmp.eq.s32.totalorder %s15, 0
    %p57 = por %p55, %p56
    %p58 = scmp.ne.s32.totalorder %s46, %s47
    %p59 = scmp.eq.s32.totalorder %s16, 1
    %p60 = por %p58, %p59
    %p62 = scmp.ne.s32.totalorder %s47, %s61
    %p63 = scmp.eq.s32.totalorder %s16, 0
    %p64 = por %p62, %p63
    %s66 = sadd.s32 %s65, 1
    %p69 = scmp.eq.s32.totalorder %s10, 1
    %p70 = scmp.ne.s32.totalorder %s65, %s67
    %p71 = scmp.eq.s32.totalorder %s10, 0
    %p72 = por %p70, %p71
    %p73 = scmp.ne.s32.totalorder %s65, %s67
    %p74 = scmp.eq.s32.totalorder %s15, 1
    %p75 = por %p73, %p74
    %p76 = scmp.ne.s32.totalorder %s67, %s68
    %p77 = scmp.eq.s32.totalorder %s15, 0
    %p78 = por %p76, %p77
    %p79 = scmp.ne.s32.totalorder %s67, %s68
    %p80 = scmp.eq.s32.totalorder %s16, 1
    %p81 = por %p79, %p80
    %p83 = scmp.ne.s32.totalorder %s68, %s82
    %p84 = scmp.eq.s32.totalorder %s16, 0
    %p85 = por %p83, %p84
    %s87 = sadd.s32 %s86, 1
    %p90 = scmp.eq.s32.totalorder %s10, 1
    %p91 = scmp.ne.s32.totalorder %s86, %s88
    %p92 = scmp.eq.s32.totalorder %s10, 0
    %p93 = por %p91, %p92
    %p94 = scmp.ne.s32.totalorder %s86, %s88
    %p95 = scmp.eq.s32.totalorder %s15, 1
    %p96 = por %p94, %p95
    %p97 = scmp.ne.s32.totalorder %s88, %s89
    %p98 = scmp.eq.s32.totalorder %s15, 0
    %p99 = por %p97, %p98
    %p100 = scmp.ne.s32.totalorder %s88, %s89
    %p101 = scmp.eq.s32.totalorder %s16, 1
    %p102 = por %p100, %p101
    %p104 = scmp.ne.s32.totalorder %s89, %s103
    %p105 = scmp.eq.s32.totalorder %s16, 0
    %p106 = por %p104, %p105
    %s107 = ssub.s32 %s10, %s17
    %p108 = scmp.eq.s32.totalorder %s107, 0
    %s110 = sadd.s32 %s109, 1
    %s111 = scalar_select %p108, %s109, %s110
    %p114 = pneg %p108
    %p115 = scmp.eq.s32.totalorder %s10, 1
    %p116 = por %p114, %p115
    %p117 = scmp.ne.s32.totalorder %s109, %s112
    %p118 = scmp.eq.s32.totalorder %s10, 0
    %p119 = por %p117, %p118
    %p120 = scmp.ne.s32.totalorder %s109, %s112
    %p121 = scmp.eq.s32.totalorder %s15, 1
    %p122 = por %p120, %p121
    %p123 = scmp.ne.s32.totalorder %s112, %s113
    %p124 = scmp.eq.s32.totalorder %s15, 0
    %p125 = por %p123, %p124
    %p126 = scmp.ne.s32.totalorder %s112, %s113
    %p127 = scmp.eq.s32.totalorder %s16, 1
    %p128 = por %p126, %p127
    %p130 = scmp.ne.s32.totalorder %s113, %s129
    %p131 = scmp.eq.s32.totalorder %s16, 0
    %p132 = por %p130, %p131
    %p133 = scmp.le.s32.totalorder 1, %s10
    %p134 = scmp.lt.s32.totalorder %s10, 3
    %p135 = pnand %p133, %p134
    %p136 = pneg %p135
    // Predicated region
    $region9: #{convblock_forward.2} parent=5 // pred_check
      _
    $region10: #{convblock_forward.2} parent=5 // pred_check_branch
      %138 = sbr.rel (%p135) target = $region12
    $region11: #{convblock_forward.2} parent=5 // pred_region
      %s139 = ssub.s32 %s10, 1
      // Predicated region
      $region13: #{convblock_forward.2} parent=11 // pred_check
        %p140 = pneg %p57
      $region14: #{convblock_forward.2} parent=11 // pred_check_branch
        %142 = sbr.rel (%p140) target = $region16
      $region15: #{convblock_forward.2} parent=11 // pred_region
        _
      $region16: #{convblock_forward.2} parent=11 // pred_fallthru
        _
      // Predicated region
      $region17: #{convblock_forward.2} parent=11 // pred_check
        %p143 = pneg %p78
      $region18: #{convblock_forward.2} parent=11 // pred_check_branch
        %145 = sbr.rel (%p143) target = $region20
      $region19: #{convblock_forward.2} parent=11 // pred_region
        _
      $region20: #{convblock_forward.2} parent=11 // pred_fallthru
        _
      // Predicated region
      $region21: #{convblock_forward.2} parent=11 // pred_check
        %p146 = pneg %p99
      $region22: #{convblock_forward.2} parent=11 // pred_check_branch
        %148 = sbr.rel (%p146) target = $region24
      $region23: #{convblock_forward.2} parent=11 // pred_region
        _
      $region24: #{convblock_forward.2} parent=11 // pred_fallthru
        _
    $region12: #{convblock_forward.2} parent=5 // pred_fallthru
      _
    %p149 = scmp.lt.s32.totalorder %s10, 2
    // Predicated region
    $region25: #{convblock_forward.2} parent=5 // pred_check
      %p150 = pneg %p149
    $region26: #{convblock_forward.2} parent=5 // pred_check_branch
      %152 = sbr.rel (%p150) target = $region28
    $region27: #{convblock_forward.2} parent=5 // pred_region
      // Predicated region
      $region29: #{convblock_forward.2} parent=27 // pred_check
        %p153 = pneg %p30
      $region30: #{convblock_forward.2} parent=27 // pred_check_branch
        %155 = sbr.rel (%p153) target = $region32
      $region31: #{convblock_forward.2} parent=27 // pred_region
        %s156 = smul.u32 32, %s10
        %p157 = scmp.lt.s32.totalorder %s156, 63
        %s158 = scalar_select %p157, %s156, 63
        %s159 = smul.addr %s158, 8
        %s160 = scalar_lea.vmem %s0, %s159
        %s161 = smul.u32 32, %s10
      $region32: #{convblock_forward.2} parent=27 // pred_fallthru
        _
    $region28: #{convblock_forward.2} parent=5 // pred_fallthru
      _
    %p162 = scmp.le.s32.totalorder 1, %s10
    %p163 = scmp.lt.s32.totalorder %s10, 3
    %p164 = pnand %p162, %p163
    %p165 = pneg %p164
    // Predicated region
    $region33: #{convblock_forward.2} parent=5 // pred_check
      _
    $region34: #{convblock_forward.2} parent=5 // pred_check_branch
      %167 = sbr.rel (%p164) target = $region36
    $region35: #{convblock_forward.2} parent=5 // pred_region
      %s168 = ssub.s32 %s10, 1
      %s169 = smul.u32 32, %s15
      %p170 = scmp.lt.s32.totalorder %s169, 63
      %s171 = scalar_select %p170, %s169, 63
      %s172 = smul.addr %s171, 8
      %s173 = scalar_lea.vmem %s0, %s172
      %p174 = pneg %p36
      %p175 = pneg %p33
      %p176 = pneg %p57
      %p177 = pneg %p54
      %p178 = pneg %p78
      %p179 = pneg %p75
      %p180 = pneg %p99
      %p181 = pneg %p96
      %p182 = pneg %p125
      %p183 = pneg %p122
      %s184 = smul.u32 32, %s15
      %p185 = scmp.lt.s32.totalorder %s184, 63
      %s186 = scalar_select %p185, %s184, 63
      %s187 = smul.addr %s186, 8
      %s188 = scalar_lea.vmem %s4, %s187
      %s189 = smul.u32 32, %s15
      %p190 = scmp.lt.s32.totalorder %s189, 63
      %s191 = scalar_select %p190, %s189, 63
      %s192 = smul.addr %s191, 8
      %s193 = scalar_lea.vmem %s0, %s192
      %s194 = smul.u32 32, %s15
      %s195 = smul.u32 32, %s15
      %p196 = scmp.lt.s32.totalorder %s195, 63
      %s197 = scalar_select %p196, %s195, 63
      %s198 = smul.addr %s197, 8
      %s199 = scalar_lea.vmem %s4, %s198
      %s200 = smul.u32 32, %s15
      %v201 = vld [vmem:[%s193] sm:$0xff]
      %v202 = vld [vmem:[%s193 + $0x8] sm:$0xff]
      %v203 = vld [vmem:[%s193 + $0x10] sm:$0xff]
      %v204 = vld [vmem:[%s193 + $0x18] sm:$0xff]
      %v205 = vld [vmem:[%s193 + $0x20] sm:$0xff]
      %v206 = vld [vmem:[%s193 + $0x28] sm:$0xff]
      %v207 = vld [vmem:[%s193 + $0x30] sm:$0xff]
      %v208 = vld [vmem:[%s193 + $0x38] sm:$0xff]
      %v209 = vld [vmem:[%s193 + $0x40] sm:$0xff]
      %v210 = vld [vmem:[%s193 + $0x48] sm:$0xff]
      %v211 = vld [vmem:[%s193 + $0x50] sm:$0xff]
      %v212 = vld [vmem:[%s193 + $0x58] sm:$0xff]
      %v213 = vld [vmem:[%s193 + $0x60] sm:$0xff]
      %v214 = vld [vmem:[%s193 + $0x68] sm:$0xff]
      %v215 = vld [vmem:[%s193 + $0x70] sm:$0xff]
      %v216 = vld [vmem:[%s193 + $0x78] sm:$0xff]
      %v217 = vld [vmem:[%s193 + $0x80] sm:$0xff]
      %v218 = vld [vmem:[%s193 + $0x88] sm:$0xff]
      %v219 = vld [vmem:[%s193 + $0x90] sm:$0xff]
      %v220 = vld [vmem:[%s193 + $0x98] sm:$0xff]
      %v221 = vld [vmem:[%s193 + $0xa0] sm:$0xff]
      %v222 = vld [vmem:[%s193 + $0xa8] sm:$0xff]
      %v223 = vld [vmem:[%s193 + $0xb0] sm:$0xff]
      %v224 = vld [vmem:[%s193 + $0xb8] sm:$0xff]
      %v225 = vld [vmem:[%s193 + $0xc0] sm:$0xff]
      %v226 = vld [vmem:[%s193 + $0xc8] sm:$0xff]
      %v227 = vld [vmem:[%s193 + $0xd0] sm:$0xff]
      %v228 = vld [vmem:[%s193 + $0xd8] sm:$0xff]
      %v229 = vld [vmem:[%s193 + $0xe0] sm:$0xff]
      %v230 = vld [vmem:[%s193 + $0xe8] sm:$0xff]
      %v231 = vld [vmem:[%s193 + $0xf0] sm:$0xff]
      %v232 = vld [vmem:[%s193 + $0xf8] sm:$0xff]
      %v233 = vld [vmem:[%s1] sm:$0xff]
      %v234 = vld [vmem:[%s1 + $0x8] sm:$0xff]
      %v235 = vld [vmem:[%s1 + $0x10] sm:$0xff]
      %v236 = vld [vmem:[%s1 + $0x18] sm:$0xff]
      %v237 = vld [vmem:[%s1 + $0x20] sm:$0xff]
      %v238 = vld [vmem:[%s1 + $0x28] sm:$0xff]
      %v239 = vld [vmem:[%s1 + $0x30] sm:$0xff]
      %v240 = vld [vmem:[%s1 + $0x38] sm:$0xff]
      %v241 = vld [vmem:[%s1 + $0x40] sm:$0xff]
      %vm242 = vcmask 588800
      %v244 = vsel %vm242, %v201, 0
      %v247 = vsel %vm242, %v202, 0
      %v250 = vsel %vm242, %v203, 0
      %v253 = vsel %vm242, %v204, 0
      %v256 = vsel %vm242, %v205, 0
      %v259 = vsel %vm242, %v206, 0
      %v262 = vsel %vm242, %v207, 0
      %v265 = vsel %vm242, %v208, 0
      %v268 = vsel %vm242, %v209, 0
      %v271 = vsel %vm242, %v210, 0
      %v274 = vsel %vm242, %v211, 0
      %v277 = vsel %vm242, %v212, 0
      %v280 = vsel %vm242, %v213, 0
      %v283 = vsel %vm242, %v214, 0
      %v286 = vsel %vm242, %v215, 0
      %v289 = vsel %vm242, %v216, 0
      %v292 = vsel %vm242, %v217, 0
      %v295 = vsel %vm242, %v218, 0
      %v298 = vsel %vm242, %v219, 0
      %v301 = vsel %vm242, %v220, 0
      %v304 = vsel %vm242, %v221, 0
      %v307 = vsel %vm242, %v222, 0
      %v310 = vsel %vm242, %v223, 0
      %v313 = vsel %vm242, %v224, 0
      %v316 = vsel %vm242, %v225, 0
      %v319 = vsel %vm242, %v226, 0
      %v322 = vsel %vm242, %v227, 0
      %v325 = vsel %vm242, %v228, 0
      %v328 = vsel %vm242, %v229, 0
      %v331 = vsel %vm242, %v230, 0
      %v334 = vsel %vm242, %v231, 0
      %v337 = vsel %vm242, %v232, 0
      %339 = vmatprep.subr.mxu0 0.0
      %340 = vmatpush1.msra.mxu0 %v233
      %341 = vmatprep.subr.mxu0 0.0
      %342 = vmatpush1.msra.mxu0 %v234
      %343 = vmatprep.subr.mxu0 0.0
      %344 = vmatpush1.msra.mxu0 %v235
      %345 = vmatprep.subr.mxu0 0.0
      %346 = vmatpush1.msra.mxu0 %v236
      %347 = vmatprep.subr.mxu0 0.0
      %348 = vmatpush1.msra.mxu0 %v237
      %349 = vmatprep.subr.mxu0 0.0
      %350 = vmatpush1.msra.mxu0 %v238
      %351 = vmatprep.subr.mxu0 0.0
      %352 = vmatpush1.msra.mxu0 %v239
      %353 = vmatprep.subr.mxu0 0.0
      %354 = vmatpush1.msra.mxu0 %v240
      %355 = vmatprep.subr.mxu0 0.0
      %356 = vmatpush1.msra.mxu0 %v241
      %357 = vmatprep.subr.mxu0 0.0
      %358 = vmatpush1.msra.mxu0 0.0
      %359 = vmatprep.subr.mxu0 0.0
      %360 = vmatpush1.msra.mxu0 0.0
      %361 = vmatprep.subr.mxu0 0.0
      %362 = vmatpush1.msra.mxu0 0.0
      %363 = vmatprep.subr.mxu0 0.0
      %364 = vmatpush1.msra.mxu0 0.0
      %365 = vmatprep.subr.mxu0 0.0
      %366 = vmatpush1.msra.mxu0 0.0
      %367 = vmatprep.subr.mxu0 0.0
      %368 = vmatpush1.msra.mxu0 0.0
      %369 = vmatprep.subr.mxu0 0.0
      %370 = vmatpush1.msra.mxu0 0.0
      %371 = vmatprep.subr.mxu0 0.0
      %372 = vmatpush1.msra.mxu0 0.0
      %373 = vmatprep.subr.mxu0 0.0
      %374 = vmatpush1.msra.mxu0 0.0
      %375 = vmatprep.subr.mxu0 0.0
      %376 = vmatpush1.msra.mxu0 0.0
      %377 = vmatprep.subr.mxu0 0.0
      %378 = vmatpush1.msra.mxu0 0.0
      %379 = vmatprep.subr.mxu0 0.0
      %380 = vmatpush1.msra.mxu0 0.0
      %381 = vmatprep.subr.mxu0 0.0
      %382 = vmatpush1.msra.mxu0 0.0
      %383 = vmatprep.subr.mxu0 0.0
      %384 = vmatpush1.msra.mxu0 0.0
      %385 = vmatprep.subr.mxu0 0.0
      %386 = vmatpush1.msra.mxu0 0.0
      %387 = vmatprep.subr.mxu0 0.0
      %388 = vmatpush1.msra.mxu0 0.0
      %389 = vmatprep.subr.mxu0 0.0
      %390 = vmatpush1.msra.mxu0 0.0
      %391 = vmatprep.subr.mxu0 0.0
      %392 = vmatpush1.msra.mxu0 0.0
      %393 = vmatprep.subr.mxu0 0.0
      %394 = vmatpush1.msra.mxu0 0.0
      %395 = vmatprep.subr.mxu0 0.0
      %396 = vmatpush1.msra.mxu0 0.0
      %397 = vmatprep.subr.mxu0 0.0
      %398 = vmatpush1.msra.mxu0 0.0
      %399 = vmatprep.subr.mxu0 0.0
      %400 = vmatpush1.msra.mxu0 0.0
      %401 = vmatprep.subr.mxu0 0.0
      %402 = vmatpush1.msra.mxu0 0.0
      %403 = vmatprep.mubr.f32.mxu0 0.0
      %404 = vmatmul.mubr.f32.gmra.mrb[0].mxu0 %v244
      %v405 = vpop.f32.mrb[0].mxu0
      %v406 = vadd.f32 0.0, %v405
      %v407 = vpop.f32.mrb[0].mxu0
      %408 = vmatprep.mubr.f32.mxu0 0.0
      %409 = vmatmul.mubr.f32.gmra.mrb[0].mxu0 %v247
      %v410 = vpop.f32.mrb[0].mxu0
      %v411 = vadd.f32 0.0, %v410
      %v412 = vpop.f32.mrb[0].mxu0
      %413 = vmatprep.mubr.f32.mxu0 0.0
      %414 = vmatmul.mubr.f32.gmra.mrb[0].mxu0 %v250
      %v415 = vpop.f32.mrb[0].mxu0
      %v416 = vadd.f32 0.0, %v415
      %v417 = vpop.f32.mrb[0].mxu0
      %418 = vmatprep.mubr.f32.mxu0 0.0
      %419 = vmatmul.mubr.f32.gmra.mrb[0].mxu0 %v253
      %v420 = vpop.f32.mrb[0].mxu0
      %v421 = vadd.f32 0.0, %v420
      %v422 = vpop.f32.mrb[0].mxu0
      %423 = vmatprep.mubr.f32.mxu0 0.0
      %424 = vmatmul.mubr.f32.gmra.mrb[0].mxu0 %v256
      %v425 = vpop.f32.mrb[0].mxu0
      %v426 = vadd.f32 0.0, %v425
      %v427 = vpop.f32.mrb[0].mxu0
      %428 = vmatprep.mubr.f32.mxu0 0.0
      %429 = vmatmul.mubr.f32.gmra.mrb[0].mxu0 %v259
      %v430 = vpop.f32.mrb[0].mxu0
      %v431 = vadd.f32 0.0, %v430
      %v432 = vpop.f32.mrb[0].mxu0
      %433 = vmatprep.mubr.f32.mxu0 0.0
      %434 = vmatmul.mubr.f32.gmra.mrb[0].mxu0 %v262
      %v435 = vpop.f32.mrb[0].mxu0
      %v436 = vadd.f32 0.0, %v435
      %v437 = vpop.f32.mrb[0].mxu0
      %438 = vmatprep.mubr.f32.mxu0 0.0
      %439 = vmatmul.mubr.f32.gmra.mrb[0].mxu0 %v265
      %v440 = vpop.f32.mrb[0].mxu0
      %v441 = vadd.f32 0.0, %v440
      %v442 = vpop.f32.mrb[0].mxu0
      %443 = vmatprep.mubr.f32.mxu0 0.0
      %444 = vmatmul.mubr.f32.gmra.mrb[0].mxu0 %v268
      %v445 = vpop.f32.mrb[0].mxu0
      %v446 = vadd.f32 0.0, %v445
      %v447 = vpop.f32.mrb[0].mxu0
      %448 = vmatprep.mubr.f32.mxu0 0.0
      %449 = vmatmul.mubr.f32.gmra.mrb[0].mxu0 %v271
      %v450 = vpop.f32.mrb[0].mxu0
      %v451 = vadd.f32 0.0, %v450
      %v452 = vpop.f32.mrb[0].mxu0
      %453 = vmatprep.mubr.f32.mxu0 0.0
      %454 = vmatmul.mubr.f32.gmra.mrb[0].mxu0 %v274
      %v455 = vpop.f32.mrb[0].mxu0
      %v456 = vadd.f32 0.0, %v455
      %v457 = vpop.f32.mrb[0].mxu0
      %458 = vmatprep.mubr.f32.mxu0 0.0
      %459 = vmatmul.mubr.f32.gmra.mrb[0].mxu0 %v277
      %v460 = vpop.f32.mrb[0].mxu0
      %v461 = vadd.f32 0.0, %v460
      %v462 = vpop.f32.mrb[0].mxu0
      %463 = vmatprep.mubr.f32.mxu0 0.0
      %464 = vmatmul.mubr.f32.gmra.mrb[0].mxu0 %v280
      %v465 = vpop.f32.mrb[0].mxu0
      %v466 = vadd.f32 0.0, %v465
      %v467 = vpop.f32.mrb[0].mxu0
      %468 = vmatprep.mubr.f32.mxu0 0.0
      %469 = vmatmul.mubr.f32.gmra.mrb[0].mxu0 %v283
      %v470 = vpop.f32.mrb[0].mxu0
      %v471 = vadd.f32 0.0, %v470
      %v472 = vpop.f32.mrb[0].mxu0
      %473 = vmatprep.mubr.f32.mxu0 0.0
      %474 = vmatmul.mubr.f32.gmra.mrb[0].mxu0 %v286
      %v475 = vpop.f32.mrb[0].mxu0
      %v476 = vadd.f32 0.0, %v475
      %v477 = vpop.f32.mrb[0].mxu0
      %478 = vmatprep.mubr.f32.mxu0 0.0
      %479 = vmatmul.mubr.f32.gmra.mrb[0].mxu0 %v289
      %v480 = vpop.f32.mrb[0].mxu0
      %v481 = vadd.f32 0.0, %v480
      %v482 = vpop.f32.mrb[0].mxu0
      %483 = vmatprep.mubr.f32.mxu0 0.0
      %484 = vmatmul.mubr.f32.gmra.mrb[0].mxu0 %v292
      %v485 = vpop.f32.mrb[0].mxu0
      %v486 = vadd.f32 0.0, %v485
      %v487 = vpop.f32.mrb[0].mxu0
      %488 = vmatprep.mubr.f32.mxu0 0.0
      %489 = vmatmul.mubr.f32.gmra.mrb[0].mxu0 %v295
      %v490 = vpop.f32.mrb[0].mxu0
      %v491 = vadd.f32 0.0, %v490
      %v492 = vpop.f32.mrb[0].mxu0
      %493 = vmatprep.mubr.f32.mxu0 0.0
      %494 = vmatmul.mubr.f32.gmra.mrb[0].mxu0 %v298
      %v495 = vpop.f32.mrb[0].mxu0
      %v496 = vadd.f32 0.0, %v495
      %v497 = vpop.f32.mrb[0].mxu0
      %498 = vmatprep.mubr.f32.mxu0 0.0
      %499 = vmatmul.mubr.f32.gmra.mrb[0].mxu0 %v301
      %v500 = vpop.f32.mrb[0].mxu0
      %v501 = vadd.f32 0.0, %v500
      %v502 = vpop.f32.mrb[0].mxu0
      %503 = vmatprep.mubr.f32.mxu0 0.0
      %504 = vmatmul.mubr.f32.gmra.mrb[0].mxu0 %v304
      %v505 = vpop.f32.mrb[0].mxu0
      %v506 = vadd.f32 0.0, %v505
      %v507 = vpop.f32.mrb[0].mxu0
      %508 = vmatprep.mubr.f32.mxu0 0.0
      %509 = vmatmul.mubr.f32.gmra.mrb[0].mxu0 %v307
      %v510 = vpop.f32.mrb[0].mxu0
      %v511 = vadd.f32 0.0, %v510
      %v512 = vpop.f32.mrb[0].mxu0
      %513 = vmatprep.mubr.f32.mxu0 0.0
      %514 = vmatmul.mubr.f32.gmra.mrb[0].mxu0 %v310
      %v515 = vpop.f32.mrb[0].mxu0
      %v516 = vadd.f32 0.0, %v515
      %v517 = vpop.f32.mrb[0].mxu0
      %518 = vmatprep.mubr.f32.mxu0 0.0
      %519 = vmatmul.mubr.f32.gmra.mrb[0].mxu0 %v313
      %v520 = vpop.f32.mrb[0].mxu0
      %v521 = vadd.f32 0.0, %v520
      %v522 = vpop.f32.mrb[0].mxu0
      %523 = vmatprep.mubr.f32.mxu0 0.0
      %524 = vmatmul.mubr.f32.gmra.mrb[0].mxu0 %v316
      %v525 = vpop.f32.mrb[0].mxu0
      %v526 = vadd.f32 0.0, %v525
      %v527 = vpop.f32.mrb[0].mxu0
      %528 = vmatprep.mubr.f32.mxu0 0.0
      %529 = vmatmul.mubr.f32.gmra.mrb[0].mxu0 %v319
      %v530 = vpop.f32.mrb[0].mxu0
      %v531 = vadd.f32 0.0, %v530
      %v532 = vpop.f32.mrb[0].mxu0
      %533 = vmatprep.mubr.f32.mxu0 0.0
      %534 = vmatmul.mubr.f32.gmra.mrb[0].mxu0 %v322
      %v535 = vpop.f32.mrb[0].mxu0
      %v536 = vadd.f32 0.0, %v535
      %v537 = vpop.f32.mrb[0].mxu0
      %538 = vmatprep.mubr.f32.mxu0 0.0
      %539 = vmatmul.mubr.f32.gmra.mrb[0].mxu0 %v325
      %v540 = vpop.f32.mrb[0].mxu0
      %v541 = vadd.f32 0.0, %v540
      %v542 = vpop.f32.mrb[0].mxu0
      %543 = vmatprep.mubr.f32.mxu0 0.0
      %544 = vmatmul.mubr.f32.gmra.mrb[0].mxu0 %v328
      %v545 = vpop.f32.mrb[0].mxu0
      %v546 = vadd.f32 0.0, %v545
      %v547 = vpop.f32.mrb[0].mxu0
      %548 = vmatprep.mubr.f32.mxu0 0.0
      %549 = vmatmul.mubr.f32.gmra.mrb[0].mxu0 %v331
      %v550 = vpop.f32.mrb[0].mxu0
      %v551 = vadd.f32 0.0, %v550
      %v552 = vpop.f32.mrb[0].mxu0
      %553 = vmatprep.mubr.f32.mxu0 0.0
      %554 = vmatmul.mubr.f32.gmra.mrb[0].mxu0 %v334
      %v555 = vpop.f32.mrb[0].mxu0
      %v556 = vadd.f32 0.0, %v555
      %v557 = vpop.f32.mrb[0].mxu0
      %558 = vmatprep.mubr.f32.mxu0 0.0
      %559 = vmatmul.mubr.f32.gmra.mrb[0].mxu0 %v337
      %v560 = vpop.f32.mrb[0].mxu0
      %v561 = vadd.f32 0.0, %v560
      %v562 = vpop.f32.mrb[0].mxu0
      %563 = vdwg.mxu0
      %v564 = vld [vmem:[%s2] sm:$0x1]
      %v566 = vlaneseq
      %v567 = vshrl.u32 %v566, 7
      %v568 = vsub.s32 0, %v567
      %v569 = vrot.slane %v564, %v568
      %v571 = vmul.f32 %v406, %v569
      %v572 = vmul.f32 %v411, %v569
      %v573 = vmul.f32 %v416, %v569
      %v574 = vmul.f32 %v421, %v569
      %v575 = vmul.f32 %v426, %v569
      %v576 = vmul.f32 %v431, %v569
      %v577 = vmul.f32 %v436, %v569
      %v578 = vmul.f32 %v441, %v569
      %v579 = vmul.f32 %v446, %v569
      %v580 = vmul.f32 %v451, %v569
      %v581 = vmul.f32 %v456, %v569
      %v582 = vmul.f32 %v461, %v569
      %v583 = vmul.f32 %v466, %v569
      %v584 = vmul.f32 %v471, %v569
      %v585 = vmul.f32 %v476, %v569
      %v586 = vmul.f32 %v481, %v569
      %v587 = vmul.f32 %v486, %v569
      %v588 = vmul.f32 %v491, %v569
      %v589 = vmul.f32 %v496, %v569
      %v590 = vmul.f32 %v501, %v569
      %v591 = vmul.f32 %v506, %v569
      %v592 = vmul.f32 %v511, %v569
      %v593 = vmul.f32 %v516, %v569
      %v594 = vmul.f32 %v521, %v569
      %v595 = vmul.f32 %v526, %v569
      %v596 = vmul.f32 %v531, %v569
      %v597 = vmul.f32 %v536, %v569
      %v598 = vmul.f32 %v541, %v569
      %v599 = vmul.f32 %v546, %v569
      %v600 = vmul.f32 %v551, %v569
      %v601 = vmul.f32 %v556, %v569
      %v602 = vmul.f32 %v561, %v569
      %v603 = vld [vmem:[%s3] sm:$0x1]
      %v605 = vlaneseq
      %v606 = vshrl.u32 %v605, 7
      %v607 = vsub.s32 0, %v606
      %v608 = vrot.slane %v603, %v607
      %v610 = vadd.f32 %v571, %v608
      %v611 = vadd.f32 %v572, %v608
      %v612 = vadd.f32 %v573, %v608
      %v613 = vadd.f32 %v574, %v608
      %v614 = vadd.f32 %v575, %v608
      %v615 = vadd.f32 %v576, %v608
      %v616 = vadd.f32 %v577, %v608
      %v617 = vadd.f32 %v578, %v608
      %v618 = vadd.f32 %v579, %v608
      %v619 = vadd.f32 %v580, %v608
      %v620 = vadd.f32 %v581, %v608
      %v621 = vadd.f32 %v582, %v608
      %v622 = vadd.f32 %v583, %v608
      %v623 = vadd.f32 %v584, %v608
      %v624 = vadd.f32 %v585, %v608
      %v625 = vadd.f32 %v586, %v608
      %v626 = vadd.f32 %v587, %v608
      %v627 = vadd.f32 %v588, %v608
      %v628 = vadd.f32 %v589, %v608
      %v629 = vadd.f32 %v590, %v608
      %v630 = vadd.f32 %v591, %v608
      %v631 = vadd.f32 %v592, %v608
      %v632 = vadd.f32 %v593, %v608
      %v633 = vadd.f32 %v594, %v608
      %v634 = vadd.f32 %v595, %v608
      %v635 = vadd.f32 %v596, %v608
      %v636 = vadd.f32 %v597, %v608
      %v637 = vadd.f32 %v598, %v608
      %v638 = vadd.f32 %v599, %v608
      %v639 = vadd.f32 %v600, %v608
      %v640 = vadd.f32 %v601, %v608
      %v641 = vadd.f32 %v602, %v608
      %vm642 = vcmp.gt.f32.partialorder %v610, 0.0
      %vm643 = vcmp.gt.f32.partialorder %v611, 0.0
      %vm644 = vcmp.gt.f32.partialorder %v612, 0.0
      %vm645 = vcmp.gt.f32.partialorder %v613, 0.0
      %vm646 = vcmp.gt.f32.partialorder %v614, 0.0
      %vm647 = vcmp.gt.f32.partialorder %v615, 0.0
      %vm648 = vcmp.gt.f32.partialorder %v616, 0.0
      %vm649 = vcmp.gt.f32.partialorder %v617, 0.0
      %vm650 = vcmp.gt.f32.partialorder %v618, 0.0
      %vm651 = vcmp.gt.f32.partialorder %v619, 0.0
      %vm652 = vcmp.gt.f32.partialorder %v620, 0.0
      %vm653 = vcmp.gt.f32.partialorder %v621, 0.0
      %vm654 = vcmp.gt.f32.partialorder %v622, 0.0
      %vm655 = vcmp.gt.f32.partialorder %v623, 0.0
      %vm656 = vcmp.gt.f32.partialorder %v624, 0.0
      %vm657 = vcmp.gt.f32.partialorder %v625, 0.0
      %vm658 = vcmp.gt.f32.partialorder %v626, 0.0
      %vm659 = vcmp.gt.f32.partialorder %v627, 0.0
      %vm660 = vcmp.gt.f32.partialorder %v628, 0.0
      %vm661 = vcmp.gt.f32.partialorder %v629, 0.0
      %vm662 = vcmp.gt.f32.partialorder %v630, 0.0
      %vm663 = vcmp.gt.f32.partialorder %v631, 0.0
      %vm664 = vcmp.gt.f32.partialorder %v632, 0.0
      %vm665 = vcmp.gt.f32.partialorder %v633, 0.0
      %vm666 = vcmp.gt.f32.partialorder %v634, 0.0
      %vm667 = vcmp.gt.f32.partialorder %v635, 0.0
      %vm668 = vcmp.gt.f32.partialorder %v636, 0.0
      %vm669 = vcmp.gt.f32.partialorder %v637, 0.0
      %vm670 = vcmp.gt.f32.partialorder %v638, 0.0
      %vm671 = vcmp.gt.f32.partialorder %v639, 0.0
      %vm672 = vcmp.gt.f32.partialorder %v640, 0.0
      %vm673 = vcmp.gt.f32.partialorder %v641, 0.0
      %v674 = vmin.f32 %v610, 0.0
      %v675 = vmin.f32 %v611, 0.0
      %v676 = vmin.f32 %v612, 0.0
      %v677 = vmin.f32 %v613, 0.0
      %v678 = vmin.f32 %v614, 0.0
      %v679 = vmin.f32 %v615, 0.0
      %v680 = vmin.f32 %v616, 0.0
      %v681 = vmin.f32 %v617, 0.0
      %v682 = vmin.f32 %v618, 0.0
      %v683 = vmin.f32 %v619, 0.0
      %v684 = vmin.f32 %v620, 0.0
      %v685 = vmin.f32 %v621, 0.0
      %v686 = vmin.f32 %v622, 0.0
      %v687 = vmin.f32 %v623, 0.0
      %v688 = vmin.f32 %v624, 0.0
      %v689 = vmin.f32 %v625, 0.0
      %v690 = vmin.f32 %v626, 0.0
      %v691 = vmin.f32 %v627, 0.0
      %v692 = vmin.f32 %v628, 0.0
      %v693 = vmin.f32 %v629, 0.0
      %v694 = vmin.f32 %v630, 0.0
      %v695 = vmin.f32 %v631, 0.0
      %v696 = vmin.f32 %v632, 0.0
      %v697 = vmin.f32 %v633, 0.0
      %v698 = vmin.f32 %v634, 0.0
      %v699 = vmin.f32 %v635, 0.0
      %v700 = vmin.f32 %v636, 0.0
      %v701 = vmin.f32 %v637, 0.0
      %v702 = vmin.f32 %v638, 0.0
      %v703 = vmin.f32 %v639, 0.0
      %v704 = vmin.f32 %v640, 0.0
      %v705 = vmin.f32 %v641, 0.0
      %v706 = vmul.f32 %v674, 1.442695
      %v707 = vpow.pop %v706
      %v708 = vmul.f32 %v675, 1.442695
      %v709 = vpow.pop %v708
      %v710 = vmul.f32 %v676, 1.442695
      %v711 = vpow.pop %v710
      %v712 = vmul.f32 %v677, 1.442695
      %v713 = vpow.pop %v712
      %v714 = vmul.f32 %v678, 1.442695
      %v715 = vpow.pop %v714
      %v716 = vmul.f32 %v679, 1.442695
      %v717 = vpow.pop %v716
      %v718 = vmul.f32 %v680, 1.442695
      %v719 = vpow.pop %v718
      %v720 = vmul.f32 %v681, 1.442695
      %v721 = vpow.pop %v720
      %v722 = vmul.f32 %v682, 1.442695
      %v723 = vpow.pop %v722
      %v724 = vmul.f32 %v683, 1.442695
      %v725 = vpow.pop %v724
      %v726 = vmul.f32 %v684, 1.442695
      %v727 = vpow.pop %v726
      %v728 = vmul.f32 %v685, 1.442695
      %v729 = vpow.pop %v728
      %v730 = vmul.f32 %v686, 1.442695
      %v731 = vpow.pop %v730
      %v732 = vmul.f32 %v687, 1.442695
      %v733 = vpow.pop %v732
      %v734 = vmul.f32 %v688, 1.442695
      %v735 = vpow.pop %v734
      %v736 = vmul.f32 %v689, 1.442695
      %v737 = vpow.pop %v736
      %v738 = vmul.f32 %v690, 1.442695
      %v739 = vpow.pop %v738
      %v740 = vmul.f32 %v691, 1.442695
      %v741 = vpow.pop %v740
      %v742 = vmul.f32 %v692, 1.442695
      %v743 = vpow.pop %v742
      %v744 = vmul.f32 %v693, 1.442695
      %v745 = vpow.pop %v744
      %v746 = vmul.f32 %v694, 1.442695
      %v747 = vpow.pop %v746
      %v748 = vmul.f32 %v695, 1.442695
      %v749 = vpow.pop %v748
      %v750 = vmul.f32 %v696, 1.442695
      %v751 = vpow.pop %v750
      %v752 = vmul.f32 %v697, 1.442695
      %v753 = vpow.pop %v752
      %v754 = vmul.f32 %v698, 1.442695
      %v755 = vpow.pop %v754
      %v756 = vmul.f32 %v699, 1.442695
      %v757 = vpow.pop %v756
      %v758 = vmul.f32 %v700, 1.442695
      %v759 = vpow.pop %v758
      %v760 = vmul.f32 %v701, 1.442695
      %v761 = vpow.pop %v760
      %v762 = vmul.f32 %v702, 1.442695
      %v763 = vpow.pop %v762
      %v764 = vmul.f32 %v703, 1.442695
      %v765 = vpow.pop %v764
      %v766 = vmul.f32 %v704, 1.442695
      %v767 = vpow.pop %v766
      %v768 = vmul.f32 %v705, 1.442695
      %v769 = vpow.pop %v768
      %v770 = vsub.f32 %v707, 1.0
      %v771 = vsub.f32 %v709, 1.0
      %v772 = vsub.f32 %v711, 1.0
      %v773 = vsub.f32 %v713, 1.0
      %v774 = vsub.f32 %v715, 1.0
      %v775 = vsub.f32 %v717, 1.0
      %v776 = vsub.f32 %v719, 1.0
      %v777 = vsub.f32 %v721, 1.0
      %v778 = vsub.f32 %v723, 1.0
      %v779 = vsub.f32 %v725, 1.0
      %v780 = vsub.f32 %v727, 1.0
      %v781 = vsub.f32 %v729, 1.0
      %v782 = vsub.f32 %v731, 1.0
      %v783 = vsub.f32 %v733, 1.0
      %v784 = vsub.f32 %v735, 1.0
      %v785 = vsub.f32 %v737, 1.0
      %v786 = vsub.f32 %v739, 1.0
      %v787 = vsub.f32 %v741, 1.0
      %v788 = vsub.f32 %v743, 1.0
      %v789 = vsub.f32 %v745, 1.0
      %v790 = vsub.f32 %v747, 1.0
      %v791 = vsub.f32 %v749, 1.0
      %v792 = vsub.f32 %v751, 1.0
      %v793 = vsub.f32 %v753, 1.0
      %v794 = vsub.f32 %v755, 1.0
      %v795 = vsub.f32 %v757, 1.0
      %v796 = vsub.f32 %v759, 1.0
      %v797 = vsub.f32 %v761, 1.0
      %v798 = vsub.f32 %v763, 1.0
      %v799 = vsub.f32 %v765, 1.0
      %v800 = vsub.f32 %v767, 1.0
      %v801 = vsub.f32 %v769, 1.0
      %v802 = vsel %vm642, %v610, %v770
      %v803 = vsel %vm643, %v611, %v771
      %v804 = vsel %vm644, %v612, %v772
      %v805 = vsel %vm645, %v613, %v773
      %v806 = vsel %vm646, %v614, %v774
      %v807 = vsel %vm647, %v615, %v775
      %v808 = vsel %vm648, %v616, %v776
      %v809 = vsel %vm649, %v617, %v777
      %v810 = vsel %vm650, %v618, %v778
      %v811 = vsel %vm651, %v619, %v779
      %v812 = vsel %vm652, %v620, %v780
      %v813 = vsel %vm653, %v621, %v781
      %v814 = vsel %vm654, %v622, %v782
      %v815 = vsel %vm655, %v623, %v783
      %v816 = vsel %vm656, %v624, %v784
      %v817 = vsel %vm657, %v625, %v785
      %v818 = vsel %vm658, %v626, %v786
      %v819 = vsel %vm659, %v627, %v787
      %v820 = vsel %vm660, %v628, %v788
      %v821 = vsel %vm661, %v629, %v789
      %v822 = vsel %vm662, %v630, %v790
      %v823 = vsel %vm663, %v631, %v791
      %v824 = vsel %vm664, %v632, %v792
      %v825 = vsel %vm665, %v633, %v793
      %v826 = vsel %vm666, %v634, %v794
      %v827 = vsel %vm667, %v635, %v795
      %v828 = vsel %vm668, %v636, %v796
      %v829 = vsel %vm669, %v637, %v797
      %v830 = vsel %vm670, %v638, %v798
      %v831 = vsel %vm671, %v639, %v799
      %v832 = vsel %vm672, %v640, %v800
      %v833 = vsel %vm673, %v641, %v801
      %vm834 = vcmask 261120
      %835 = vst.msk [vmem:[%s199] sm:$0xff] %vm834, %v802
      %836 = vst.msk [vmem:[%s199 + $0x8] sm:$0xff] %vm834, %v803
      %837 = vst.msk [vmem:[%s199 + $0x10] sm:$0xff] %vm834, %v804
      %838 = vst.msk [vmem:[%s199 + $0x18] sm:$0xff] %vm834, %v805
      %839 = vst.msk [vmem:[%s199 + $0x20] sm:$0xff] %vm834, %v806
      %840 = vst.msk [vmem:[%s199 + $0x28] sm:$0xff] %vm834, %v807
      %841 = vst.msk [vmem:[%s199 + $0x30] sm:$0xff] %vm834, %v808
      %842 = vst.msk [vmem:[%s199 + $0x38] sm:$0xff] %vm834, %v809
      %843 = vst.msk [vmem:[%s199 + $0x40] sm:$0xff] %vm834, %v810
      %844 = vst.msk [vmem:[%s199 + $0x48] sm:$0xff] %vm834, %v811
      %845 = vst.msk [vmem:[%s199 + $0x50] sm:$0xff] %vm834, %v812
      %846 = vst.msk [vmem:[%s199 + $0x58] sm:$0xff] %vm834, %v813
      %847 = vst.msk [vmem:[%s199 + $0x60] sm:$0xff] %vm834, %v814
      %848 = vst.msk [vmem:[%s199 + $0x68] sm:$0xff] %vm834, %v815
      %849 = vst.msk [vmem:[%s199 + $0x70] sm:$0xff] %vm834, %v816
      %850 = vst.msk [vmem:[%s199 + $0x78] sm:$0xff] %vm834, %v817
      %851 = vst.msk [vmem:[%s199 + $0x80] sm:$0xff] %vm834, %v818
      %852 = vst.msk [vmem:[%s199 + $0x88] sm:$0xff] %vm834, %v819
      %853 = vst.msk [vmem:[%s199 + $0x90] sm:$0xff] %vm834, %v820
      %854 = vst.msk [vmem:[%s199 + $0x98] sm:$0xff] %vm834, %v821
      %855 = vst.msk [vmem:[%s199 + $0xa0] sm:$0xff] %vm834, %v822
      %856 = vst.msk [vmem:[%s199 + $0xa8] sm:$0xff] %vm834, %v823
      %857 = vst.msk [vmem:[%s199 + $0xb0] sm:$0xff] %vm834, %v824
      %858 = vst.msk [vmem:[%s199 + $0xb8] sm:$0xff] %vm834, %v825
      %859 = vst.msk [vmem:[%s199 + $0xc0] sm:$0xff] %vm834, %v826
      %860 = vst.msk [vmem:[%s199 + $0xc8] sm:$0xff] %vm834, %v827
      %861 = vst.msk [vmem:[%s199 + $0xd0] sm:$0xff] %vm834, %v828
      %862 = vst.msk [vmem:[%s199 + $0xd8] sm:$0xff] %vm834, %v829
      %863 = vst.msk [vmem:[%s199 + $0xe0] sm:$0xff] %vm834, %v830
      %864 = vst.msk [vmem:[%s199 + $0xe8] sm:$0xff] %vm834, %v831
      %865 = vst.msk [vmem:[%s199 + $0xf0] sm:$0xff] %vm834, %v832
      %866 = vst.msk [vmem:[%s199 + $0xf8] sm:$0xff] %vm834, %v833
      %s867 = smul.u32 32, %s15
      %p868 = scmp.lt.s32.totalorder %s867, 63
      %s869 = scalar_select %p868, %s867, 63
      %s870 = smul.addr %s869, 8
      %s871 = scalar_lea.vmem %s4, %s870
      // Predicated region
      $region37: #{convblock_forward.2} parent=35 // pred_check
        %p872 = pneg %p122
      $region38: #{convblock_forward.2} parent=35 // pred_check_branch
        %874 = sbr.rel (%p872) target = $region40
      $region39: #{convblock_forward.2} parent=35 // pred_region
        %s875 = smul.u32 32, %s15
      $region40: #{convblock_forward.2} parent=35 // pred_fallthru
        _
    $region36: #{convblock_forward.2} parent=5 // pred_fallthru
      _
    %p876 = scmp.le.s32.totalorder 2, %s10
    // Predicated region
    $region41: #{convblock_forward.2} parent=5 // pred_check
      %p877 = pneg %p876
    $region42: #{convblock_forward.2} parent=5 // pred_check_branch
      %879 = sbr.rel (%p877) target = $region44
    $region43: #{convblock_forward.2} parent=5 // pred_region
      %s880 = ssub.s32 %s10, 2
      // Predicated region
      $region45: #{convblock_forward.2} parent=43 // pred_check
        %p881 = pneg %p128
      $region46: #{convblock_forward.2} parent=43 // pred_check_branch
        %883 = sbr.rel (%p881) target = $region48
      $region47: #{convblock_forward.2} parent=43 // pred_region
        %s884 = smul.u32 32, %s16
        %p885 = scmp.lt.s32.totalorder %s884, 63
        %s886 = scalar_select %p885, %s884, 63
        %s887 = smul.addr %s886, 8
        %s888 = scalar_lea.vmem %s4, %s887
      $region48: #{convblock_forward.2} parent=43 // pred_fallthru
        _
    $region44: #{convblock_forward.2} parent=5 // pred_fallthru
      _
  $region6: #{convblock_forward.2} parent=0 // loop_footer
    %s14 = sadd.s32 1, %s10
  $region7: #{convblock_forward.2} parent=0 // loop_footer_branch
    %9 = sbr.rel target = $region3
  $region8: #{convblock_forward.2} parent=0 // loop_exit
    _

// kernel: convblock_forward.3
$region0: #{convblock_forward.3}
  #allocation0 [shape = 'u32[]', space=smem, size = 0x4, offset = 0x4, fixed_abs, tag = 'smem constant byte address 0x4 - core index']
  #allocation1 [shape = 'u32[144,128]{1,0:T(1,128)}', space=vmem, size = 0x12000, scoped, tag = 'internal scratch']
  %s0 = inlined_call_operand.vmem [shape: f32[128,288], index: 0, kind: input, shape index: {}]
  %s1 = inlined_call_operand.vmem [shape: f32[288,32], index: 1, kind: input, shape index: {}]
  %s2 = inlined_call_operand.vmem [shape: f32[1,32], index: 2, kind: input, shape index: {}]
  %s3 = inlined_call_operand.vmem [shape: f32[1,32], index: 3, kind: input, shape index: {}]
  %s4 = inlined_call_operand.hbm [shape: f32[128,32], index: 4, kind: output, shape index: {}]
  %s5 = sld [smem:[#allocation0]]
  $region26: #{convblock_forward.3} parent=0
    _
  %s7 = ssub.s32 1, %s5
  %s8 = scalar_select 0, %s7, %s5
  $region1: #{convblock_forward.3} parent=0
    #allocation2 [shape = 'u8[65536]{0}', space=vmem, size = 0x10000, scoped, tag = 'output window, operand 0, single buffered']
    #allocation3 [shape = 's32[1]{0}', space=sflag, size = 0x4, scoped, tag = 'scoped memory for convblock_forward.3']
    %9 = vsyncpa [#allocation3], 0
    // Predicated region
    $region2: #{convblock_forward.3} parent=1 // pred_check
      _
    $region3: #{convblock_forward.3} parent=1 // pred_check_branch
      %11 = sbr.rel (0) target = $region5
    $region4: #{convblock_forward.3} parent=1 // pred_region
      _
    $region5: #{convblock_forward.3} parent=1 // pred_fallthru
      _
    // Predicated region
    $region6: #{convblock_forward.3} parent=1 // pred_check
      _
    $region7: #{convblock_forward.3} parent=1 // pred_check_branch
      %13 = sbr.rel (0) target = $region9
    $region8: #{convblock_forward.3} parent=1 // pred_region
      _
    $region9: #{convblock_forward.3} parent=1 // pred_fallthru
      _
    // Predicated region
    $region10: #{convblock_forward.3} parent=1 // pred_check
      _
    $region11: #{convblock_forward.3} parent=1 // pred_check_branch
      %15 = sbr.rel (0) target = $region13
    $region12: #{convblock_forward.3} parent=1 // pred_region
      _
    $region13: #{convblock_forward.3} parent=1 // pred_fallthru
      _
    // Predicated region
    $region14: #{convblock_forward.3} parent=1 // pred_check
      _
    $region15: #{convblock_forward.3} parent=1 // pred_check_branch
      %17 = sbr.rel (0) target = $region17
    $region16: #{convblock_forward.3} parent=1 // pred_region
      _
    $region17: #{convblock_forward.3} parent=1 // pred_fallthru
      _
    %v18 = vld [vmem:[%s0] sm:$0xff]
    %v19 = vld [vmem:[%s0 + $0x8] sm:$0xff]
    %v20 = vld [vmem:[%s0 + $0x10] sm:$0xff]
    %v21 = vld [vmem:[%s0 + $0x18] sm:$0xff]
    %v22 = vld [vmem:[%s0 + $0x20] sm:$0xff]
    %v23 = vld [vmem:[%s0 + $0x28] sm:$0xff]
    %v24 = vld [vmem:[%s0 + $0x30] sm:$0xff]
    %v25 = vld [vmem:[%s0 + $0x38] sm:$0xff]
    %v26 = vld [vmem:[%s0 + $0x40] sm:$0xff]
    %v27 = vld [vmem:[%s0 + $0x48] sm:$0xff]
    %v28 = vld [vmem:[%s0 + $0x50] sm:$0xff]
    %v29 = vld [vmem:[%s0 + $0x58] sm:$0xff]
    %v30 = vld [vmem:[%s0 + $0x60] sm:$0xff]
    %v31 = vld [vmem:[%s0 + $0x68] sm:$0xff]
    %v32 = vld [vmem:[%s0 + $0x70] sm:$0xff]
    %v33 = vld [vmem:[%s0 + $0x78] sm:$0xff]
    %v34 = vld [vmem:[%s0 + $0x80] sm:$0xff]
    %v35 = vld [vmem:[%s0 + $0x88] sm:$0xff]
    %v36 = vld [vmem:[%s0 + $0x90] sm:$0xff]
    %v37 = vld [vmem:[%s0 + $0x98] sm:$0xff]
    %v38 = vld [vmem:[%s0 + $0xa0] sm:$0xff]
    %v39 = vld [vmem:[%s0 + $0xa8] sm:$0xff]
    %v40 = vld [vmem:[%s0 + $0xb0] sm:$0xff]
    %v41 = vld [vmem:[%s0 + $0xb8] sm:$0xff]
    %v42 = vld [vmem:[%s0 + $0xc0] sm:$0xff]
    %v43 = vld [vmem:[%s0 + $0xc8] sm:$0xff]
    %v44 = vld [vmem:[%s0 + $0xd0] sm:$0xff]
    %v45 = vld [vmem:[%s0 + $0xd8] sm:$0xff]
    %v46 = vld [vmem:[%s0 + $0xe0] sm:$0xff]
    %v47 = vld [vmem:[%s0 + $0xe8] sm:$0xff]
    %v48 = vld [vmem:[%s0 + $0xf0] sm:$0xff]
    %v49 = vld [vmem:[%s0 + $0xf8] sm:$0xff]
    %v50 = vld [vmem:[%s0 + $0x100] sm:$0xff]
    %v51 = vld [vmem:[%s0 + $0x108] sm:$0xff]
    %v52 = vld [vmem:[%s0 + $0x110] sm:$0xff]
    %v53 = vld [vmem:[%s0 + $0x118] sm:$0xff]
    %v54 = vld [vmem:[%s0 + $0x120] sm:$0xff]
    %v55 = vld [vmem:[%s0 + $0x128] sm:$0xff]
    %v56 = vld [vmem:[%s0 + $0x130] sm:$0xff]
    %v57 = vld [vmem:[%s0 + $0x138] sm:$0xff]
    %v58 = vld [vmem:[%s0 + $0x140] sm:$0xff]
    %v59 = vld [vmem:[%s0 + $0x148] sm:$0xff]
    %v60 = vld [vmem:[%s0 + $0x150] sm:$0xff]
    %v61 = vld [vmem:[%s0 + $0x158] sm:$0xff]
    %v62 = vld [vmem:[%s0 + $0x160] sm:$0xff]
    %v63 = vld [vmem:[%s0 + $0x168] sm:$0xff]
    %v64 = vld [vmem:[%s0 + $0x170] sm:$0xff]
    %v65 = vld [vmem:[%s0 + $0x178] sm:$0xff]
    %v66 = vld [vmem:[%s1] sm:$0xff]
    %v67 = vld [vmem:[%s1 + $0x8] sm:$0xff]
    %v68 = vld [vmem:[%s1 + $0x10] sm:$0xff]
    %v69 = vld [vmem:[%s1 + $0x18] sm:$0xff]
    %v70 = vld [vmem:[%s1 + $0x20] sm:$0xff]
    %v71 = vld [vmem:[%s1 + $0x28] sm:$0xff]
    %v72 = vld [vmem:[%s1 + $0x30] sm:$0xff]
    %v73 = vld [vmem:[%s1 + $0x38] sm:$0xff]
    %v74 = vld [vmem:[%s1 + $0x40] sm:$0xff]
    %v75 = vld [vmem:[%s1 + $0x48] sm:$0xff]
    %v76 = vld [vmem:[%s1 + $0x50] sm:$0xff]
    %v77 = vld [vmem:[%s1 + $0x58] sm:$0xff]
    %v78 = vld [vmem:[%s1 + $0x60] sm:$0xff]
    %v79 = vld [vmem:[%s1 + $0x68] sm:$0xff]
    %v80 = vld [vmem:[%s1 + $0x70] sm:$0xff]
    %v81 = vld [vmem:[%s1 + $0x78] sm:$0xff]
    %v82 = vld [vmem:[%s1 + $0x80] sm:$0xff]
    %v83 = vld [vmem:[%s1 + $0x88] sm:$0xff]
    %v84 = vld [vmem:[%s1 + $0x90] sm:$0xff]
    %v85 = vld [vmem:[%s1 + $0x98] sm:$0xff]
    %v86 = vld [vmem:[%s1 + $0xa0] sm:$0xff]
    %v87 = vld [vmem:[%s1 + $0xa8] sm:$0xff]
    %v88 = vld [vmem:[%s1 + $0xb0] sm:$0xff]
    %v89 = vld [vmem:[%s1 + $0xb8] sm:$0xff]
    %v90 = vld [vmem:[%s1 + $0xc0] sm:$0xff]
    %v91 = vld [vmem:[%s1 + $0xc8] sm:$0xff]
    %v92 = vld [vmem:[%s1 + $0xd0] sm:$0xff]
    %v93 = vld [vmem:[%s1 + $0xd8] sm:$0xff]
    %v94 = vld [vmem:[%s1 + $0xe0] sm:$0xff]
    %v95 = vld [vmem:[%s1 + $0xe8] sm:$0xff]
    %v96 = vld [vmem:[%s1 + $0xf0] sm:$0xff]
    %v97 = vld [vmem:[%s1 + $0xf8] sm:$0xff]
    %v98 = vld [vmem:[%s1 + $0x100] sm:$0xff]
    %v99 = vld [vmem:[%s1 + $0x108] sm:$0xff]
    %v100 = vld [vmem:[%s1 + $0x110] sm:$0xff]
    %v101 = vld [vmem:[%s1 + $0x118] sm:$0xff]
    %vm102 = vcmask 261120
    %v104 = vsel %vm102, %v20, 0
    %v107 = vsel %vm102, %v23, 0
    %v110 = vsel %vm102, %v26, 0
    %v113 = vsel %vm102, %v29, 0
    %v116 = vsel %vm102, %v32, 0
    %v119 = vsel %vm102, %v35, 0
    %v122 = vsel %vm102, %v38, 0
    %v125 = vsel %vm102, %v41, 0
    %v128 = vsel %vm102, %v44, 0
    %v131 = vsel %vm102, %v47, 0
    %v134 = vsel %vm102, %v50, 0
    %v137 = vsel %vm102, %v53, 0
    %v140 = vsel %vm102, %v56, 0
    %v143 = vsel %vm102, %v59, 0
    %v146 = vsel %vm102, %v62, 0
    %v149 = vsel %vm102, %v65, 0
    %151 = vmatprep.subr.mxu0 0.0
    %152 = vmatpush1.msra.mxu0 %v66
    %153 = vmatprep.subr.mxu0 0.0
    %154 = vmatpush1.msra.mxu0 %v67
    %155 = vmatprep.subr.mxu0 0.0
    %156 = vmatpush1.msra.mxu0 %v68
    %157 = vmatprep.subr.mxu0 0.0
    %158 = vmatpush1.msra.mxu0 %v69
    %159 = vmatprep.subr.mxu0 0.0
    %160 = vmatpush1.msra.mxu0 %v70
    %161 = vmatprep.subr.mxu0 0.0
    %162 = vmatpush1.msra.mxu0 %v71
    %163 = vmatprep.subr.mxu0 0.0
    %164 = vmatpush1.msra.mxu0 %v72
    %165 = vmatprep.subr.mxu0 0.0
    %166 = vmatpush1.msra.mxu0 %v73
    %167 = vmatprep.subr.mxu0 0.0
    %168 = vmatpush1.msra.mxu0 %v74
    %169 = vmatprep.subr.mxu0 0.0
    %170 = vmatpush1.msra.mxu0 %v75
    %171 = vmatprep.subr.mxu0 0.0
    %172 = vmatpush1.msra.mxu0 %v76
    %173 = vmatprep.subr.mxu0 0.0
    %174 = vmatpush1.msra.mxu0 %v77
    %175 = vmatprep.subr.mxu0 0.0
    %176 = vmatpush1.msra.mxu0 %v78
    %177 = vmatprep.subr.mxu0 0.0
    %178 = vmatpush1.msra.mxu0 %v79
    %179 = vmatprep.subr.mxu0 0.0
    %180 = vmatpush1.msra.mxu0 %v80
    %181 = vmatprep.subr.mxu0 0.0
    %182 = vmatpush1.msra.mxu0 %v81
    %183 = vmatprep.subr.mxu0 0.0
    %184 = vmatpush1.msra.mxu0 %v82
    %185 = vmatprep.subr.mxu0 0.0
    %186 = vmatpush1.msra.mxu0 %v83
    %187 = vmatprep.subr.mxu0 0.0
    %188 = vmatpush1.msra.mxu0 %v84
    %189 = vmatprep.subr.mxu0 0.0
    %190 = vmatpush1.msra.mxu0 %v85
    %191 = vmatprep.subr.mxu0 0.0
    %192 = vmatpush1.msra.mxu0 %v86
    %193 = vmatprep.subr.mxu0 0.0
    %194 = vmatpush1.msra.mxu0 %v87
    %195 = vmatprep.subr.mxu0 0.0
    %196 = vmatpush1.msra.mxu0 %v88
    %197 = vmatprep.subr.mxu0 0.0
    %198 = vmatpush1.msra.mxu0 %v89
    %199 = vmatprep.subr.mxu0 0.0
    %200 = vmatpush1.msra.mxu0 %v90
    %201 = vmatprep.subr.mxu0 0.0
    %202 = vmatpush1.msra.mxu0 %v91
    %203 = vmatprep.subr.mxu0 0.0
    %204 = vmatpush1.msra.mxu0 %v92
    %205 = vmatprep.subr.mxu0 0.0
    %206 = vmatpush1.msra.mxu0 %v93
    %207 = vmatprep.subr.mxu0 0.0
    %208 = vmatpush1.msra.mxu0 %v94
    %209 = vmatprep.subr.mxu0 0.0
    %210 = vmatpush1.msra.mxu0 %v95
    %211 = vmatprep.subr.mxu0 0.0
    %212 = vmatpush1.msra.mxu0 %v96
    %213 = vmatprep.subr.mxu0 0.0
    %214 = vmatpush1.msra.mxu0 %v97
    %215 = vmatprep.mubr.f32.mxu0 %v19
    %216 = vmatmul.mubr.f32.gmra.mrb[0].mxu0 %v18
    %v217 = vpop.f32.mrb[0].mxu0
    %v218 = vadd.f32 0.0, %v217
    %v219 = vpop.f32.mrb[0].mxu0
    %220 = vmatprep.mubr.f32.mxu0 %v22
    %221 = vmatmul.mubr.f32.gmra.mrb[0].mxu0 %v21
    %v222 = vpop.f32.mrb[0].mxu0
    %v223 = vadd.f32 0.0, %v222
    %v224 = vpop.f32.mrb[0].mxu0
    %225 = vmatprep.mubr.f32.mxu0 %v25
    %226 = vmatmul.mubr.f32.gmra.mrb[0].mxu0 %v24
    %v227 = vpop.f32.mrb[0].mxu0
    %v228 = vadd.f32 0.0, %v227
    %v229 = vpop.f32.mrb[0].mxu0
    %230 = vmatprep.mubr.f32.mxu0 %v28
    %231 = vmatmul.mubr.f32.gmra.mrb[0].mxu0 %v27
    %v232 = vpop.f32.mrb[0].mxu0
    %v233 = vadd.f32 0.0, %v232
    %v234 = vpop.f32.mrb[0].mxu0
    %235 = vmatprep.mubr.f32.mxu0 %v31
    %236 = vmatmul.mubr.f32.gmra.mrb[0].mxu0 %v30
    %v237 = vpop.f32.mrb[0].mxu0
    %v238 = vadd.f32 0.0, %v237
    %v239 = vpop.f32.mrb[0].mxu0
    %240 = vmatprep.mubr.f32.mxu0 %v34
    %241 = vmatmul.mubr.f32.gmra.mrb[0].mxu0 %v33
    %v242 = vpop.f32.mrb[0].mxu0
    %v243 = vadd.f32 0.0, %v242
    %v244 = vpop.f32.mrb[0].mxu0
    %245 = vmatprep.mubr.f32.mxu0 %v37
    %246 = vmatmul.mubr.f32.gmra.mrb[0].mxu0 %v36
    %v247 = vpop.f32.mrb[0].mxu0
    %v248 = vadd.f32 0.0, %v247
    %v249 = vpop.f32.mrb[0].mxu0
    %250 = vmatprep.mubr.f32.mxu0 %v40
    %251 = vmatmul.mubr.f32.gmra.mrb[0].mxu0 %v39
    %v252 = vpop.f32.mrb[0].mxu0
    %v253 = vadd.f32 0.0, %v252
    %v254 = vpop.f32.mrb[0].mxu0
    %255 = vmatprep.mubr.f32.mxu0 %v43
    %256 = vmatmul.mubr.f32.gmra.mrb[0].mxu0 %v42
    %v257 = vpop.f32.mrb[0].mxu0
    %v258 = vadd.f32 0.0, %v257
    %v259 = vpop.f32.mrb[0].mxu0
    %260 = vmatprep.mubr.f32.mxu0 %v46
    %261 = vmatmul.mubr.f32.gmra.mrb[0].mxu0 %v45
    %v262 = vpop.f32.mrb[0].mxu0
    %v263 = vadd.f32 0.0, %v262
    %v264 = vpop.f32.mrb[0].mxu0
    %265 = vmatprep.mubr.f32.mxu0 %v49
    %266 = vmatmul.mubr.f32.gmra.mrb[0].mxu0 %v48
    %v267 = vpop.f32.mrb[0].mxu0
    %v268 = vadd.f32 0.0, %v267
    %v269 = vpop.f32.mrb[0].mxu0
    %270 = vmatprep.mubr.f32.mxu0 %v52
    %271 = vmatmul.mubr.f32.gmra.mrb[0].mxu0 %v51
    %v272 = vpop.f32.mrb[0].mxu0
    %v273 = vadd.f32 0.0, %v272
    %v274 = vpop.f32.mrb[0].mxu0
    %275 = vmatprep.mubr.f32.mxu0 %v55
    %276 = vmatmul.mubr.f32.gmra.mrb[0].mxu0 %v54
    %v277 = vpop.f32.mrb[0].mxu0
    %v278 = vadd.f32 0.0, %v277
    %v279 = vpop.f32.mrb[0].mxu0
    %280 = vmatprep.mubr.f32.mxu0 %v58
    %281 = vmatmul.mubr.f32.gmra.mrb[0].mxu0 %v57
    %v282 = vpop.f32.mrb[0].mxu0
    %v283 = vadd.f32 0.0, %v282
    %v284 = vpop.f32.mrb[0].mxu0
    %285 = vmatprep.mubr.f32.mxu0 %v61
    %286 = vmatmul.mubr.f32.gmra.mrb[0].mxu0 %v60
    %v287 = vpop.f32.mrb[0].mxu0
    %v288 = vadd.f32 0.0, %v287
    %v289 = vpop.f32.mrb[0].mxu0
    %290 = vmatprep.mubr.f32.mxu0 %v64
    %291 = vmatmul.mubr.f32.gmra.mrb[0].mxu0 %v63
    %v292 = vpop.f32.mrb[0].mxu0
    %v293 = vadd.f32 0.0, %v292
    %v294 = vpop.f32.mrb[0].mxu0
    %295 = vdwg.mxu0
    %296 = vmatprep.subr.mxu0 0.0
    %297 = vmatpush1.msra.mxu0 %v98
    %298 = vmatprep.subr.mxu0 0.0
    %299 = vmatpush1.msra.mxu0 %v99
    %300 = vmatprep.subr.mxu0 0.0
    %301 = vmatpush1.msra.mxu0 %v100
    %302 = vmatprep.subr.mxu0 0.0
    %303 = vmatpush1.msra.mxu0 %v101
    %304 = vmatprep.subr.mxu0 0.0
    %305 = vmatpush1.msra.mxu0 0.0
    %306 = vmatprep.subr.mxu0 0.0
    %307 = vmatpush1.msra.mxu0 0.0
    %308 = vmatprep.subr.mxu0 0.0
    %309 = vmatpush1.msra.mxu0 0.0
    %310 = vmatprep.subr.mxu0 0.0
    %311 = vmatpush1.msra.mxu0 0.0
    %312 = vmatprep.subr.mxu0 0.0
    %313 = vmatpush1.msra.mxu0 0.0
    %314 = vmatprep.subr.mxu0 0.0
    %315 = vmatpush1.msra.mxu0 0.0
    %316 = vmatprep.subr.mxu0 0.0
    %317 = vmatpush1.msra.mxu0 0.0
    %318 = vmatprep.subr.mxu0 0.0
    %319 = vmatpush1.msra.mxu0 0.0
    %320 = vmatprep.subr.mxu0 0.0
    %321 = vmatpush1.msra.mxu0 0.0
    %322 = vmatprep.subr.mxu0 0.0
    %323 = vmatpush1.msra.mxu0 0.0
    %324 = vmatprep.subr.mxu0 0.0
    %325 = vmatpush1.msra.mxu0 0.0
    %326 = vmatprep.subr.mxu0 0.0
    %327 = vmatpush1.msra.mxu0 0.0
    %328 = vmatprep.subr.mxu0 0.0
    %329 = vmatpush1.msra.mxu0 0.0
    %330 = vmatprep.subr.mxu0 0.0
    %331 = vmatpush1.msra.mxu0 0.0
    %332 = vmatprep.subr.mxu0 0.0
    %333 = vmatpush1.msra.mxu0 0.0
    %334 = vmatprep.subr.mxu0 0.0
    %335 = vmatpush1.msra.mxu0 0.0
    %336 = vmatprep.subr.mxu0 0.0
    %337 = vmatpush1.msra.mxu0 0.0
    %338 = vmatprep.subr.mxu0 0.0
    %339 = vmatpush1.msra.mxu0 0.0
    %340 = vmatprep.subr.mxu0 0.0
    %341 = vmatpush1.msra.mxu0 0.0
    %342 = vmatprep.subr.mxu0 0.0
    %343 = vmatpush1.msra.mxu0 0.0
    %344 = vmatprep.subr.mxu0 0.0
    %345 = vmatpush1.msra.mxu0 0.0
    %346 = vmatprep.subr.mxu0 0.0
    %347 = vmatpush1.msra.mxu0 0.0
    %348 = vmatprep.subr.mxu0 0.0
    %349 = vmatpush1.msra.mxu0 0.0
    %350 = vmatprep.subr.mxu0 0.0
    %351 = vmatpush1.msra.mxu0 0.0
    %352 = vmatprep.subr.mxu0 0.0
    %353 = vmatpush1.msra.mxu0 0.0
    %354 = vmatprep.subr.mxu0 0.0
    %355 = vmatpush1.msra.mxu0 0.0
    %356 = vmatprep.subr.mxu0 0.0
    %357 = vmatpush1.msra.mxu0 0.0
    %358 = vmatprep.subr.mxu0 0.0
    %359 = vmatpush1.msra.mxu0 0.0
    %360 = vmatprep.mubr.f32.mxu0 0.0
    %361 = vmatmul.mubr.f32.gmra.mrb[0].mxu0 %v104
    %v362 = vpop.f32.mrb[0].mxu0
    %v363 = vadd.f32 %v218, %v362
    %v364 = vpop.f32.mrb[0].mxu0
    %365 = vmatprep.mubr.f32.mxu0 0.0
    %366 = vmatmul.mubr.f32.gmra.mrb[0].mxu0 %v107
    %v367 = vpop.f32.mrb[0].mxu0
    %v368 = vadd.f32 %v223, %v367
    %v369 = vpop.f32.mrb[0].mxu0
    %370 = vmatprep.mubr.f32.mxu0 0.0
    %371 = vmatmul.mubr.f32.gmra.mrb[0].mxu0 %v110
    %v372 = vpop.f32.mrb[0].mxu0
    %v373 = vadd.f32 %v228, %v372
    %v374 = vpop.f32.mrb[0].mxu0
    %375 = vmatprep.mubr.f32.mxu0 0.0
    %376 = vmatmul.mubr.f32.gmra.mrb[0].mxu0 %v113
    %v377 = vpop.f32.mrb[0].mxu0
    %v378 = vadd.f32 %v233, %v377
    %v379 = vpop.f32.mrb[0].mxu0
    %380 = vmatprep.mubr.f32.mxu0 0.0
    %381 = vmatmul.mubr.f32.gmra.mrb[0].mxu0 %v116
    %v382 = vpop.f32.mrb[0].mxu0
    %v383 = vadd.f32 %v238, %v382
    %v384 = vpop.f32.mrb[0].mxu0
    %385 = vmatprep.mubr.f32.mxu0 0.0
    %386 = vmatmul.mubr.f32.gmra.mrb[0].mxu0 %v119
    %v387 = vpop.f32.mrb[0].mxu0
    %v388 = vadd.f32 %v243, %v387
    %v389 = vpop.f32.mrb[0].mxu0
    %390 = vmatprep.mubr.f32.mxu0 0.0
    %391 = vmatmul.mubr.f32.gmra.mrb[0].mxu0 %v122
    %v392 = vpop.f32.mrb[0].mxu0
    %v393 = vadd.f32 %v248, %v392
    %v394 = vpop.f32.mrb[0].mxu0
    %395 = vmatprep.mubr.f32.mxu0 0.0
    %396 = vmatmul.mubr.f32.gmra.mrb[0].mxu0 %v125
    %v397 = vpop.f32.mrb[0].mxu0
    %v398 = vadd.f32 %v253, %v397
    %v399 = vpop.f32.mrb[0].mxu0
    %400 = vmatprep.mubr.f32.mxu0 0.0
    %401 = vmatmul.mubr.f32.gmra.mrb[0].mxu0 %v128
    %v402 = vpop.f32.mrb[0].mxu0
    %v403 = vadd.f32 %v258, %v402
    %v404 = vpop.f32.mrb[0].mxu0
    %405 = vmatprep.mubr.f32.mxu0 0.0
    %406 = vmatmul.mubr.f32.gmra.mrb[0].mxu0 %v131
    %v407 = vpop.f32.mrb[0].mxu0
    %v408 = vadd.f32 %v263, %v407
    %v409 = vpop.f32.mrb[0].mxu0
    %410 = vmatprep.mubr.f32.mxu0 0.0
    %411 = vmatmul.mubr.f32.gmra.mrb[0].mxu0 %v134
    %v412 = vpop.f32.mrb[0].mxu0
    %v413 = vadd.f32 %v268, %v412
    %v414 = vpop.f32.mrb[0].mxu0
    %415 = vmatprep.mubr.f32.mxu0 0.0
    %416 = vmatmul.mubr.f32.gmra.mrb[0].mxu0 %v137
    %v417 = vpop.f32.mrb[0].mxu0
    %v418 = vadd.f32 %v273, %v417
    %v419 = vpop.f32.mrb[0].mxu0
    %420 = vmatprep.mubr.f32.mxu0 0.0
    %421 = vmatmul.mubr.f32.gmra.mrb[0].mxu0 %v140
    %v422 = vpop.f32.mrb[0].mxu0
    %v423 = vadd.f32 %v278, %v422
    %v424 = vpop.f32.mrb[0].mxu0
    %425 = vmatprep.mubr.f32.mxu0 0.0
    %426 = vmatmul.mubr.f32.gmra.mrb[0].mxu0 %v143
    %v427 = vpop.f32.mrb[0].mxu0
    %v428 = vadd.f32 %v283, %v427
    %v429 = vpop.f32.mrb[0].mxu0
    %430 = vmatprep.mubr.f32.mxu0 0.0
    %431 = vmatmul.mubr.f32.gmra.mrb[0].mxu0 %v146
    %v432 = vpop.f32.mrb[0].mxu0
    %v433 = vadd.f32 %v288, %v432
    %v434 = vpop.f32.mrb[0].mxu0
    %435 = vmatprep.mubr.f32.mxu0 0.0
    %436 = vmatmul.mubr.f32.gmra.mrb[0].mxu0 %v149
    %v437 = vpop.f32.mrb[0].mxu0
    %v438 = vadd.f32 %v293, %v437
    %v439 = vpop.f32.mrb[0].mxu0
    %440 = vdwg.mxu0
    %v441 = vld [vmem:[%s2] sm:$0x1]
    %v443 = vlaneseq
    %v444 = vshrl.u32 %v443, 7
    %v445 = vsub.s32 0, %v444
    %v446 = vrot.slane %v441, %v445
    %v448 = vmul.f32 %v363, %v446
    %v449 = vmul.f32 %v368, %v446
    %v450 = vmul.f32 %v373, %v446
    %v451 = vmul.f32 %v378, %v446
    %v452 = vmul.f32 %v383, %v446
    %v453 = vmul.f32 %v388, %v446
    %v454 = vmul.f32 %v393, %v446
    %v455 = vmul.f32 %v398, %v446
    %v456 = vmul.f32 %v403, %v446
    %v457 = vmul.f32 %v408, %v446
    %v458 = vmul.f32 %v413, %v446
    %v459 = vmul.f32 %v418, %v446
    %v460 = vmul.f32 %v423, %v446
    %v461 = vmul.f32 %v428, %v446
    %v462 = vmul.f32 %v433, %v446
    %v463 = vmul.f32 %v438, %v446
    %v464 = vld [vmem:[%s3] sm:$0x1]
    %v466 = vlaneseq
    %v467 = vshrl.u32 %v466, 7
    %v468 = vsub.s32 0, %v467
    %v469 = vrot.slane %v464, %v468
    %v471 = vadd.f32 %v448, %v469
    %v472 = vadd.f32 %v449, %v469
    %v473 = vadd.f32 %v450, %v469
    %v474 = vadd.f32 %v451, %v469
    %v475 = vadd.f32 %v452, %v469
    %v476 = vadd.f32 %v453, %v469
    %v477 = vadd.f32 %v454, %v469
    %v478 = vadd.f32 %v455, %v469
    %v479 = vadd.f32 %v456, %v469
    %v480 = vadd.f32 %v457, %v469
    %v481 = vadd.f32 %v458, %v469
    %v482 = vadd.f32 %v459, %v469
    %v483 = vadd.f32 %v460, %v469
    %v484 = vadd.f32 %v461, %v469
    %v485 = vadd.f32 %v462, %v469
    %v486 = vadd.f32 %v463, %v469
    %vm487 = vcmp.gt.f32.partialorder %v471, 0.0
    %vm488 = vcmp.gt.f32.partialorder %v472, 0.0
    %vm489 = vcmp.gt.f32.partialorder %v473, 0.0
    %vm490 = vcmp.gt.f32.partialorder %v474, 0.0
    %vm491 = vcmp.gt.f32.partialorder %v475, 0.0
    %vm492 = vcmp.gt.f32.partialorder %v476, 0.0
    %vm493 = vcmp.gt.f32.partialorder %v477, 0.0
    %vm494 = vcmp.gt.f32.partialorder %v478, 0.0
    %vm495 = vcmp.gt.f32.partialorder %v479, 0.0
    %vm496 = vcmp.gt.f32.partialorder %v480, 0.0
    %vm497 = vcmp.gt.f32.partialorder %v481, 0.0
    %vm498 = vcmp.gt.f32.partialorder %v482, 0.0
    %vm499 = vcmp.gt.f32.partialorder %v483, 0.0
    %vm500 = vcmp.gt.f32.partialorder %v484, 0.0
    %vm501 = vcmp.gt.f32.partialorder %v485, 0.0
    %vm502 = vcmp.gt.f32.partialorder %v486, 0.0
    %v503 = vmin.f32 %v471, 0.0
    %v504 = vmin.f32 %v472, 0.0
    %v505 = vmin.f32 %v473, 0.0
    %v506 = vmin.f32 %v474, 0.0
    %v507 = vmin.f32 %v475, 0.0
    %v508 = vmin.f32 %v476, 0.0
    %v509 = vmin.f32 %v477, 0.0
    %v510 = vmin.f32 %v478, 0.0
    %v511 = vmin.f32 %v479, 0.0
    %v512 = vmin.f32 %v480, 0.0
    %v513 = vmin.f32 %v481, 0.0
    %v514 = vmin.f32 %v482, 0.0
    %v515 = vmin.f32 %v483, 0.0
    %v516 = vmin.f32 %v484, 0.0
    %v517 = vmin.f32 %v485, 0.0
    %v518 = vmin.f32 %v486, 0.0
    %v519 = vmul.f32 %v503, 1.442695
    %v520 = vpow.pop %v519
    %v521 = vmul.f32 %v504, 1.442695
    %v522 = vpow.pop %v521
    %v523 = vmul.f32 %v505, 1.442695
    %v524 = vpow.pop %v523
    %v525 = vmul.f32 %v506, 1.442695
    %v526 = vpow.pop %v525
    %v527 = vmul.f32 %v507, 1.442695
    %v528 = vpow.pop %v527
    %v529 = vmul.f32 %v508, 1.442695
    %v530 = vpow.pop %v529
    %v531 = vmul.f32 %v509, 1.442695
    %v532 = vpow.pop %v531
    %v533 = vmul.f32 %v510, 1.442695
    %v534 = vpow.pop %v533
    %v535 = vmul.f32 %v511, 1.442695
    %v536 = vpow.pop %v535
    %v537 = vmul.f32 %v512, 1.442695
    %v538 = vpow.pop %v537
    %v539 = vmul.f32 %v513, 1.442695
    %v540 = vpow.pop %v539
    %v541 = vmul.f32 %v514, 1.442695
    %v542 = vpow.pop %v541
    %v543 = vmul.f32 %v515, 1.442695
    %v544 = vpow.pop %v543
    %v545 = vmul.f32 %v516, 1.442695
    %v546 = vpow.pop %v545
    %v547 = vmul.f32 %v517, 1.442695
    %v548 = vpow.pop %v547
    %v549 = vmul.f32 %v518, 1.442695
    %v550 = vpow.pop %v549
    %v551 = vsub.f32 %v520, 1.0
    %v552 = vsub.f32 %v522, 1.0
    %v553 = vsub.f32 %v524, 1.0
    %v554 = vsub.f32 %v526, 1.0
    %v555 = vsub.f32 %v528, 1.0
    %v556 = vsub.f32 %v530, 1.0
    %v557 = vsub.f32 %v532, 1.0
    %v558 = vsub.f32 %v534, 1.0
    %v559 = vsub.f32 %v536, 1.0
    %v560 = vsub.f32 %v538, 1.0
    %v561 = vsub.f32 %v540, 1.0
    %v562 = vsub.f32 %v542, 1.0
    %v563 = vsub.f32 %v544, 1.0
    %v564 = vsub.f32 %v546, 1.0
    %v565 = vsub.f32 %v548, 1.0
    %v566 = vsub.f32 %v550, 1.0
    %v567 = vsel %vm487, %v471, %v551
    %v568 = vsel %vm488, %v472, %v552
    %v569 = vsel %vm489, %v473, %v553
    %v570 = vsel %vm490, %v474, %v554
    %v571 = vsel %vm491, %v475, %v555
    %v572 = vsel %vm492, %v476, %v556
    %v573 = vsel %vm493, %v477, %v557
    %v574 = vsel %vm494, %v478, %v558
    %v575 = vsel %vm495, %v479, %v559
    %v576 = vsel %vm496, %v480, %v560
    %v577 = vsel %vm497, %v481, %v561
    %v578 = vsel %vm498, %v482, %v562
    %v579 = vsel %vm499, %v483, %v563
    %v580 = vsel %vm500, %v484, %v564
    %v581 = vsel %vm501, %v485, %v565
    %v582 = vsel %vm502, %v486, %v566
    %583 = vst.msk [vmem:[#allocation2] sm:$0xff] %vm102, %v567
    %584 = vst.msk [vmem:[#allocation2 + $0x8] sm:$0xff] %vm102, %v568
    %585 = vst.msk [vmem:[#allocation2 + $0x10] sm:$0xff] %vm102, %v569
    %586 = vst.msk [vmem:[#allocation2 + $0x18] sm:$0xff] %vm102, %v570
    %587 = vst.msk [vmem:[#allocation2 + $0x20] sm:$0xff] %vm102, %v571
    %588 = vst.msk [vmem:[#allocation2 + $0x28] sm:$0xff] %vm102, %v572
    %589 = vst.msk [vmem:[#allocation2 + $0x30] sm:$0xff] %vm102, %v573
    %590 = vst.msk [vmem:[#allocation2 + $0x38] sm:$0xff] %vm102, %v574
    %591 = vst.msk [vmem:[#allocation2 + $0x40] sm:$0xff] %vm102, %v575
    %592 = vst.msk [vmem:[#allocation2 + $0x48] sm:$0xff] %vm102, %v576
    %593 = vst.msk [vmem:[#allocation2 + $0x50] sm:$0xff] %vm102, %v577
    %594 = vst.msk [vmem:[#allocation2 + $0x58] sm:$0xff] %vm102, %v578
    %595 = vst.msk [vmem:[#allocation2 + $0x60] sm:$0xff] %vm102, %v579
    %596 = vst.msk [vmem:[#allocation2 + $0x68] sm:$0xff] %vm102, %v580
    %597 = vst.msk [vmem:[#allocation2 + $0x70] sm:$0xff] %vm102, %v581
    %598 = vst.msk [vmem:[#allocation2 + $0x78] sm:$0xff] %vm102, %v582
    // Predicated region
    $region18: #{convblock_forward.3} parent=1 // pred_check
      _
    $region19: #{convblock_forward.3} parent=1 // pred_check_branch
      %600 = sbr.rel (0) target = $region21
    $region20: #{convblock_forward.3} parent=1 // pred_region
      %s602 = ssub.s32 2048, 2048
      %603 = vsyncadd [#allocation3], %s602
      %s604 = sshll.u32 [#allocation2], 4
      %s605 = int_to_ptr.vmem [resolvable:$true] %s604
      %610 = dma.vmem_to_hbm [thread:$0]  %s605, 2048, %s4, [#allocation3], 128, 128, 8
    $region21: #{convblock_forward.3} parent=1 // pred_fallthru
      _
    // Predicated region
    $region22: #{convblock_forward.3} parent=1 // pred_check
      _
    $region23: #{convblock_forward.3} parent=1 // pred_check_branch
      %612 = sbr.rel (0) target = $region25
    $region24: #{convblock_forward.3} parent=1 // pred_region
      %613 = dma.done [#allocation3], 2048
    $region25: #{convblock_forward.3} parent=1 // pred_fallthru
      _
    %614 = vsyncpa [#allocation3], 1

</llo_original>
